<compile_context>
chip_gen: v7x
topology: tpu7x:2x2x1
jax: 0.10.0
libtpu: 0.0.40
codegen_flags: <defaults>
</compile_context>

<pallas_src>
import functools

import jax
import jax.numpy as jnp
import numpy as np
from jax.experimental import pallas as pl
from jax.experimental.pallas import tpu as pltpu

MODEL_DIM = 64
BLOCK_SIZE = 32
NUM_HEADS = 2
WINDOW_SIZE = 8
HEAD_SIZE = MODEL_DIM // NUM_HEADS
LN_EPS = 1e-5
NEG_BIAS = -1e30   # additive mask value (robust alternative to -inf)


def _layernorm(x, gamma, beta):
    mu = jnp.mean(x, axis=-1, keepdims=True)
    var = jnp.mean((x - mu) ** 2, axis=-1, keepdims=True)
    xn = (x - mu) * jax.lax.rsqrt(var + LN_EPS)
    return xn * gamma + beta


def decoder_kernel(x_ref, ln1_g_ref, ln1_b_ref,
                   wqkv_ref, bproj_ref,
                   ln2_g_ref, ln2_b_ref,
                   w1_ref, b1_ref, w2_ref, b2_ref,
                   bias_ref, ones_bd_ref,
                   out_ref, *, batch_block, seq_len):
    BB, T, C, HS, NH = batch_block, seq_len, MODEL_DIM, HEAD_SIZE, NUM_HEADS
    cd = wqkv_ref.dtype                       # MXU operand dtype (bf16 / f32)
    f32 = jnp.float32

    x = x_ref[...]                            # (BB*T, C) — already flat, no reshape
    ln1_x = _layernorm(x, ln1_g_ref[0], ln1_b_ref[0])

    # One fused projection: columns = [q_h0|q_h1 | k_h0|k_h1 | (v@Wp)_h0|(v@Wp)_h1]
    # (BB*T, C) @ (C, 4C) -> (BB*T, 4C), f32 accumulation.
    qkv = jnp.dot(ln1_x.astype(cd), wqkv_ref[...], preferred_element_type=f32)

    bias = bias_ref[...]                      # (T, NH*T): 0 allowed, -1e30 masked
    ones_bd = ones_bd_ref[...]                # (NH*T, NH*T) block-diag ones
    scale = HS ** -0.5

    sa_rows, attn_rows = [], []
    for bb in range(BB):                      # static loop, tiny trip count
        r0 = bb * T

        # Per-head scores, concatenated lane-wise straight into the output layout.
        s_heads = []
        for h in range(NH):
            q = qkv[r0:r0 + T, h * HS:(h + 1) * HS]
            k = qkv[r0:r0 + T, C + h * HS:C + (h + 1) * HS]
            s_heads.append(jnp.dot(q.astype(cd), k.T.astype(cd),
                                   preferred_element_type=f32))
        s = jnp.concatenate(s_heads, axis=-1) * scale + bias      # (T, NH*T), f32

        # Shared per-row max is mathematically identical to per-head softmax
        # (exp(-1e30 - m) underflows to exactly 0 for masked positions).
        m = jnp.max(s, axis=-1, keepdims=True)
        e = jnp.exp(s - m)                                        # (T, NH*T)
        # Per-head denominators, broadcast across each head's T lanes, in one
        # MXU op (segmented sum via block-diagonal ones).
        denom = jnp.dot(e, ones_bd, preferred_element_type=f32)
        attn = e * pl.reciprocal(denom, approx=True)              # (T, NH*T)
        attn_rows.append(attn)
        # attn / projection / FFW dropout are identity (eval mode)

        # vp columns already carry v_h @ Wproj[h]; stack heads along sublanes
        # so sa = attn_slab @ vstack is a single matmul (no head concat needed).
        vp = qkv[r0:r0 + T, 2 * C:4 * C]                          # (T, 2C)
        vstack = jnp.concatenate([vp[:, :C], vp[:, C:]], axis=0)  # (NH*T, C)
        sa_rows.append(jnp.dot(attn.astype(cd), vstack.astype(cd),
                               preferred_element_type=f32))       # (T, C)

    sa = sa_rows[0] if BB == 1 else jnp.concatenate(sa_rows, axis=0)
    attn_all = attn_rows[0] if BB == 1 else jnp.concatenate(attn_rows, axis=0)

    x1 = x + sa + bproj_ref[0]                # residual 1 (+ projection bias)

    ln2_x = _layernorm(x1, ln2_g_ref[0], ln2_b_ref[0])
    h1 = jnp.maximum(
        jnp.dot(ln2_x.astype(cd), w1_ref[...],
                preferred_element_type=f32) + b1_ref[0], 0.0)
    ffw = jnp.dot(h1.astype(cd), w2_ref[...],
                  preferred_element_type=f32) + b2_ref[0]

    # Single lane-dense store: (BB*T, C + NH*T) = (BB*T, 128) per grid step.
    out_ref[...] = jnp.concatenate([x1 + ffw, attn_all], axis=-1)


def _choose_batch_block(B, T):
    """v5e/v6e: collapse grid (cap M=BB*T<=512 for vreg pressure).
    v7x (2 TensorCores): only shard across cores when B is large enough."""
    kind = ""
    try:
        kind = jax.devices()[0].device_kind.lower()
    except Exception:
        pass
    cap = max(1, 512 // T)                     # M = BB*T <= 512
    if ("v7" in kind or "tpu7" in kind) and B >= 8:
        cap = min(cap, max(1, B // 2))         # >=1 grid step per TensorCore
    cap = min(cap, B)
    bb = 1
    for d in range(1, cap + 1):                # largest divisor of B <= cap
        if B % d == 0:
            bb = d
    return bb


def _cost_estimate(B, T, C):
    NH, HS = NUM_HEADS, HEAD_SIZE
    flops_per_b = (
        2 * T * C * (4 * C)                    # fused QKV / V@Wproj projection
        + NH * 2 * T * T * HS                  # per-head score matmuls
        + 2 * T * (NH * T) * (NH * T)          # denominator broadcast matmul
        + 2 * T * (NH * T) * C                 # attn @ stacked (V Wproj)
        + 2 * (2 * T * C * 4 * C)              # feed-forward
    )
    transc_per_b = NH * T * T + 6 * T          # exp + rsqrt + reciprocal
    param_bytes = 4 * (4 * C * C + 8 * C * C + T * NH * T + (NH * T) ** 2 + 12 * C)
    io_bytes = 4 * (B * T * C + B * T * (C + NH * T))
    return pl.CostEstimate(flops=B * flops_per_b,
                           transcendentals=B * transc_per_b,
                           bytes_accessed=param_bytes + io_bytes)


def block_sparse_decoder(x, params, mask, *, batch_block=None,
                         weight_dtype=jnp.bfloat16):
    B, T, C = x.shape
    assert C == MODEL_DIM and T == BLOCK_SIZE
    NH, HS = NUM_HEADS, HEAD_SIZE
    BB = _choose_batch_block(B, T) if batch_block is None else batch_block
    assert B % BB == 0
    num_steps = B // BB

    # Host-side weight packing.
    # Q/K per head side by side; V pre-merged with its slice of Wproj so the
    # in-kernel output projection disappears (associativity: attn@(v@Wp_h)).
    pack = lambda w: jnp.transpose(w, (1, 0, 2)).reshape(C, NH * HS)
    wproj = params["wproj"]
    wvp = jnp.concatenate(
        [params["wv"][h] @ wproj[h * HS:(h + 1) * HS, :] for h in range(NH)],
        axis=-1)                                               # (C, NH*C)
    wqkv = jnp.concatenate([pack(params["wq"]), pack(params["wk"]), wvp],
                           axis=-1).astype(weight_dtype)       # (C, 4C)
    w1 = params["w1"].astype(weight_dtype)
    w2 = params["w2"].astype(weight_dtype)

    # Additive mask bias tiled to the (T, NH*T) score-slab layout (stays f32).
    bias_slab = jnp.tile(jnp.where(mask, NEG_BIAS, 0.0).astype(jnp.float32),
                         (1, NH))
    # Block-diagonal ones: segmented (per-head) softmax denominator via MXU.
    ones_bd = jnp.asarray(np.kron(np.eye(NH, dtype=np.float32),
                                  np.ones((T, T), np.float32)))

    x_flat = x.reshape(B * T, C)

    full = lambda shape: pl.BlockSpec(shape, lambda b: (0,) * len(shape))
    in_specs = [
        pl.BlockSpec((BB * T, C), lambda b: (b, 0)),          # x (flat)
        full((1, C)), full((1, C)),                           # ln1 gamma/beta
        full((C, 4 * C)),                                     # fused Wqkv/Wvp
        full((1, C)),                                         # bproj
        full((1, C)), full((1, C)),                           # ln2 gamma/beta
        full((C, 4 * C)), full((1, 4 * C)),                   # W1, b1
        full((4 * C, C)), full((1, C)),                       # W2, b2
        full((T, NH * T)),                                    # additive mask bias
        full((NH * T, NH * T)),                               # block-diag ones
    ]
    out_specs = pl.BlockSpec((BB * T, C + NH * T), lambda b: (b, 0))
    out_shape = jax.ShapeDtypeStruct((B * T, C + NH * T), jnp.float32)

    slab = pl.pallas_call(
        functools.partial(decoder_kernel, batch_block=BB, seq_len=T),
        out_shape=out_shape,
        grid_spec=pltpu.PrefetchScalarGridSpec(
            num_scalar_prefetch=0,
            grid=(num_steps,),
            in_specs=in_specs,
            out_specs=out_specs,
        ),
        compiler_params=pltpu.CompilerParams(
            dimension_semantics=("parallel",)),
        cost_estimate=_cost_estimate(B, T, C),
    )(x_flat,
      params["ln1_g"], params["ln1_b"],
      wqkv, params["bproj"],
      params["ln2_g"], params["ln2_b"],
      w1, params["b1"], w2, params["b2"],
      bias_slab, ones_bd)

    # Layout plumbing back to (B,T,C) and PyTorch-style (NH,B,T,T) attention.
    out = slab[:, :C].reshape(B, T, C)
    attn = slab[:, C:].reshape(B, T, NH, T).transpose(2, 0, 1, 3)
    return out, attn


def build_local_window_mask(T, window_size):
    i = np.arange(T)[:, None]
    j = np.arange(T)[None, :]
    allowed = (j <= i) & (j >= i - window_size + 1)
    return ~allowed                                  # True => masked


def init_params(key):
    ks = jax.random.split(key, 10)
    scale = 0.05
    C, H, NH = MODEL_DIM, HEAD_SIZE, NUM_HEADS
    return {
        "ln1_g": jnp.ones((1, C), jnp.float32),
        "ln1_b": jnp.zeros((1, C), jnp.float32),
        "wq": scale * jax.random.normal(ks[0], (NH, C, H), jnp.float32),
        "wk": scale * jax.random.normal(ks[1], (NH, C, H), jnp.float32),
        "wv": scale * jax.random.normal(ks[2], (NH, C, H), jnp.float32),
        "wproj": scale * jax.random.normal(ks[3], (C, C), jnp.float32),
        "bproj": scale * jax.random.normal(ks[4], (1, C), jnp.float32),
        "ln2_g": jnp.ones((1, C), jnp.float32),
        "ln2_b": jnp.zeros((1, C), jnp.float32),
        "w1": scale * jax.random.normal(ks[5], (C, 4 * C), jnp.float32),
        "b1": scale * jax.random.normal(ks[6], (1, 4 * C), jnp.float32),
        "w2": scale * jax.random.normal(ks[7], (4 * C, C), jnp.float32),
        "b2": scale * jax.random.normal(ks[8], (1, C), jnp.float32),
    }


def reference_forward(x, p, mask):
    """Pure-JAX reference matching the PyTorch forward (eval mode)."""
    ln1 = _layernorm(x, p["ln1_g"][0], p["ln1_b"][0])
    outs, attns = [], []
    for h in range(NUM_HEADS):
        q = ln1 @ p["wq"][h]
        k = ln1 @ p["wk"][h]
        v = ln1 @ p["wv"][h]
        s = jnp.einsum("btd,bsd->bts", q, k) * HEAD_SIZE ** -0.5
        s = jnp.where(mask[None], -jnp.inf, s)
        a = jax.nn.softmax(s, axis=-1)
        attns.append(a)
        outs.append(jnp.einsum("bts,bsd->btd", a, v))
    cat = jnp.concatenate(outs, axis=-1)
    sa = cat @ p["wproj"] + p["bproj"][0]
    x1 = x + sa
    ln2 = _layernorm(x1, p["ln2_g"][0], p["ln2_b"][0])
    ffw = jnp.maximum(ln2 @ p["w1"] + p["b1"][0], 0.0) @ p["w2"] + p["b2"][0]
    return x1 + ffw, jnp.stack(attns)


if __name__ == "__main__":
    key = jax.random.PRNGKey(0)
    kx, kp = jax.random.split(key)

    B, T, C = 2, BLOCK_SIZE, MODEL_DIM          # x: (2, 32, 64)
    x = jax.random.normal(kx, (B, T, C), jnp.float32)
    params = init_params(kp)
    mask = jnp.asarray(build_local_window_mask(T, WINDOW_SIZE))

    ref_out, ref_attn = reference_forward(x, params, mask)

    # TODO(synk): nn.Dropout(p=0.2) layers are eval-mode identity here;
    # stochastic training-mode dropout is not implemented.

    # Fast path (default): bf16 MXU operands, f32 accumulation.
    out, attn = block_sparse_decoder(x, params, mask)
    out = jax.block_until_ready(out)
    attn = jax.block_until_ready(attn)
    np.testing.assert_allclose(np.asarray(out), np.asarray(ref_out),
                               rtol=4e-2, atol=4e-2)
    np.testing.assert_allclose(np.asarray(attn), np.asarray(ref_attn),
                               rtol=4e-2, atol=4e-2)

    # Exact-math path: f32 operands, tight tolerance (approx-reciprocal only).
    out32, attn32 = block_sparse_decoder(x, params, mask,
                                         weight_dtype=jnp.float32)
    out32 = jax.block_until_ready(out32)
    attn32 = jax.block_until_ready(attn32)
    np.testing.assert_allclose(np.asarray(out32), np.asarray(ref_out),
                               rtol=1.5e-3, atol=1.5e-3)
    np.testing.assert_allclose(np.asarray(attn32), np.asarray(ref_attn),
                               rtol=1.5e-3, atol=1.5e-3)

    print("KERNEL_OK")
</pallas_src>

<mosaic_0001>
module attributes {stable_mosaic.version = 11 : i64} {
  func.func @decoder_kernel(%arg0: i32, %arg1: memref<64x64xf32, #tpu.memory_space<vmem>>, %arg2: memref<1x64xf32, #tpu.memory_space<vmem>>, %arg3: memref<1x64xf32, #tpu.memory_space<vmem>>, %arg4: memref<64x256xbf16, #tpu.memory_space<vmem>>, %arg5: memref<1x64xf32, #tpu.memory_space<vmem>>, %arg6: memref<1x64xf32, #tpu.memory_space<vmem>>, %arg7: memref<1x64xf32, #tpu.memory_space<vmem>>, %arg8: memref<64x256xbf16, #tpu.memory_space<vmem>>, %arg9: memref<1x256xf32, #tpu.memory_space<vmem>>, %arg10: memref<256x64xbf16, #tpu.memory_space<vmem>>, %arg11: memref<1x64xf32, #tpu.memory_space<vmem>>, %arg12: memref<32x64xf32, #tpu.memory_space<vmem>>, %arg13: memref<64x64xf32, #tpu.memory_space<vmem>>, %arg14: memref<64x128xf32, #tpu.memory_space<vmem>>) attributes {dimension_semantics = [#tpu.dimension_semantics<parallel>], iteration_bounds = array<i64: 1>, scalar_prefetch = 0 : i64, scratch_operands = 0 : i64, tpu.core_type = #tpu.core_type<tc>, window_params = [{transform_indices = @transform_0, window_bounds = array<i64: 64, 64>}, {pipeline_mode = #tpu.pipeline_mode<synchronous>, transform_indices = @transform_1, window_bounds = array<i64: 1, 64>}, {pipeline_mode = #tpu.pipeline_mode<synchronous>, transform_indices = @transform_2, window_bounds = array<i64: 1, 64>}, {pipeline_mode = #tpu.pipeline_mode<synchronous>, transform_indices = @transform_3, window_bounds = array<i64: 64, 256>}, {pipeline_mode = #tpu.pipeline_mode<synchronous>, transform_indices = @transform_4, window_bounds = array<i64: 1, 64>}, {pipeline_mode = #tpu.pipeline_mode<synchronous>, transform_indices = @transform_5, window_bounds = array<i64: 1, 64>}, {pipeline_mode = #tpu.pipeline_mode<synchronous>, transform_indices = @transform_6, window_bounds = array<i64: 1, 64>}, {pipeline_mode = #tpu.pipeline_mode<synchronous>, transform_indices = @transform_7, window_bounds = array<i64: 64, 256>}, {pipeline_mode = #tpu.pipeline_mode<synchronous>, transform_indices = @transform_8, window_bounds = array<i64: 1, 256>}, {pipeline_mode = #tpu.pipeline_mode<synchronous>, transform_indices = @transform_9, window_bounds = array<i64: 256, 64>}, {pipeline_mode = #tpu.pipeline_mode<synchronous>, transform_indices = @transform_10, window_bounds = array<i64: 1, 64>}, {pipeline_mode = #tpu.pipeline_mode<synchronous>, transform_indices = @transform_11, window_bounds = array<i64: 32, 64>}, {pipeline_mode = #tpu.pipeline_mode<synchronous>, transform_indices = @transform_12, window_bounds = array<i64: 64, 64>}, {transform_indices = @transform_13, window_bounds = array<i64: 64, 128>}]} {
    %c0 = arith.constant 0 : index
    %c0_0 = arith.constant 0 : index
    %0 = vector.load %arg1[%c0, %c0_0] : memref<64x64xf32, #tpu.memory_space<vmem>>, vector<64x64xf32>
    %c0_1 = arith.constant 0 : index
    %c0_2 = arith.constant 0 : index
    %1 = vector.load %arg2[%c0_1, %c0_2] : memref<1x64xf32, #tpu.memory_space<vmem>>, vector<1x64xf32>
    %2 = vector.shape_cast %1 : vector<1x64xf32> to vector<64xf32>
    %c0_3 = arith.constant 0 : index
    %c0_4 = arith.constant 0 : index
    %3 = vector.load %arg3[%c0_3, %c0_4] : memref<1x64xf32, #tpu.memory_space<vmem>>, vector<1x64xf32>
    %4 = vector.shape_cast %3 : vector<1x64xf32> to vector<64xf32>
    %cst = arith.constant dense<0.000000e+00> : vector<64xf32>
    %5 = vector.multi_reduction <add>, %0, %cst [1] : vector<64x64xf32> to vector<64xf32>
    %6 = vector.shape_cast %5 : vector<64xf32> to vector<64x1xf32>
    %cst_5 = arith.constant 6.400000e+01 : f32
    %7 = vector.broadcast %cst_5 : f32 to vector<64x1xf32>
    %8 = arith.divf %6, %7 : vector<64x1xf32>
    %9 = vector.broadcast %8 : vector<64x1xf32> to vector<64x64xf32>
    %10 = arith.subf %0, %9 : vector<64x64xf32>
    %11 = arith.mulf %10, %10 : vector<64x64xf32>
    %cst_6 = arith.constant dense<0.000000e+00> : vector<64xf32>
    %12 = vector.multi_reduction <add>, %11, %cst_6 [1] : vector<64x64xf32> to vector<64xf32>
    %13 = vector.shape_cast %12 : vector<64xf32> to vector<64x1xf32>
    %cst_7 = arith.constant 6.400000e+01 : f32
    %14 = vector.broadcast %cst_7 : f32 to vector<64x1xf32>
    %15 = arith.divf %13, %14 : vector<64x1xf32>
    %16 = vector.broadcast %8 : vector<64x1xf32> to vector<64x64xf32>
    %17 = arith.subf %0, %16 : vector<64x64xf32>
    %cst_8 = arith.constant 9.99999974E-6 : f32
    %18 = vector.broadcast %cst_8 : f32 to vector<64x1xf32>
    %19 = arith.addf %15, %18 : vector<64x1xf32>
    %20 = math.rsqrt %19 : vector<64x1xf32>
    %21 = vector.broadcast %20 : vector<64x1xf32> to vector<64x64xf32>
    %22 = arith.mulf %17, %21 : vector<64x64xf32>
    %23 = vector.shape_cast %2 : vector<64xf32> to vector<1x64xf32>
    %24 = vector.broadcast %23 : vector<1x64xf32> to vector<64x64xf32>
    %25 = arith.mulf %22, %24 : vector<64x64xf32>
    %26 = vector.shape_cast %4 : vector<64xf32> to vector<1x64xf32>
    %27 = vector.broadcast %26 : vector<1x64xf32> to vector<64x64xf32>
    %28 = arith.addf %25, %27 : vector<64x64xf32>
    %29 = arith.truncf %28 : vector<64x64xf32> to vector<64x64xbf16>
    %c0_9 = arith.constant 0 : index
    %c0_10 = arith.constant 0 : index
    %30 = vector.load %arg4[%c0_9, %c0_10] : memref<64x256xbf16, #tpu.memory_space<vmem>>, vector<64x256xbf16>
    %cst_11 = arith.constant dense<0.000000e+00> : vector<64x256xf32>
    %31 = tpu.matmul %29, %30, %cst_11 {dimension_numbers = #tpu.dot_dimension_numbers<[1], [0], [0], [1], [0, 0, 1, 1], [], []>} : vector<64x64xbf16>, vector<64x256xbf16>, vector<64x256xf32> -> vector<64x256xf32>
    %c0_12 = arith.constant 0 : index
    %c0_13 = arith.constant 0 : index
    %32 = vector.load %arg12[%c0_12, %c0_13] : memref<32x64xf32, #tpu.memory_space<vmem>>, vector<32x64xf32>
    %c0_14 = arith.constant 0 : index
    %c0_15 = arith.constant 0 : index
    %33 = vector.load %arg13[%c0_14, %c0_15] : memref<64x64xf32, #tpu.memory_space<vmem>>, vector<64x64xf32>
    %34 = vector.extract_strided_slice %31 {offsets = [0, 0], sizes = [32, 32], strides = [1, 1]} : vector<64x256xf32> to vector<32x32xf32>
    %35 = vector.extract_strided_slice %31 {offsets = [0, 64], sizes = [32, 32], strides = [1, 1]} : vector<64x256xf32> to vector<32x32xf32>
    %36 = arith.truncf %34 : vector<32x32xf32> to vector<32x32xbf16>
    %37 = tpu.transpose %35, [1, 0] : vector<32x32xf32> -> vector<32x32xf32>
    %38 = arith.truncf %37 : vector<32x32xf32> to vector<32x32xbf16>
    %cst_16 = arith.constant dense<0.000000e+00> : vector<32x32xf32>
    %39 = tpu.matmul %36, %38, %cst_16 {dimension_numbers = #tpu.dot_dimension_numbers<[1], [0], [0], [1], [0, 0, 1, 1], [], []>} : vector<32x32xbf16>, vector<32x32xbf16>, vector<32x32xf32> -> vector<32x32xf32>
    %40 = vector.extract_strided_slice %31 {offsets = [0, 32], sizes = [32, 32], strides = [1, 1]} : vector<64x256xf32> to vector<32x32xf32>
    %41 = vector.extract_strided_slice %31 {offsets = [0, 96], sizes = [32, 32], strides = [1, 1]} : vector<64x256xf32> to vector<32x32xf32>
    %42 = arith.truncf %40 : vector<32x32xf32> to vector<32x32xbf16>
    %43 = tpu.transpose %41, [1, 0] : vector<32x32xf32> -> vector<32x32xf32>
    %44 = arith.truncf %43 : vector<32x32xf32> to vector<32x32xbf16>
    %cst_17 = arith.constant dense<0.000000e+00> : vector<32x32xf32>
    %45 = tpu.matmul %42, %44, %cst_17 {dimension_numbers = #tpu.dot_dimension_numbers<[1], [0], [0], [1], [0, 0, 1, 1], [], []>} : vector<32x32xbf16>, vector<32x32xbf16>, vector<32x32xf32> -> vector<32x32xf32>
    %46 = tpu.concatenate %39, %45 in 1 : vector<32x32xf32>, vector<32x32xf32> -> vector<32x64xf32>
    %cst_18 = arith.constant 0.176776692 : f32
    %47 = vector.broadcast %cst_18 : f32 to vector<32x64xf32>
    %48 = arith.mulf %46, %47 : vector<32x64xf32>
    %49 = arith.addf %48, %32 : vector<32x64xf32>
    %cst_19 = arith.constant dense<0xFF800000> : vector<32xf32>
    %50 = vector.multi_reduction <maximumf>, %49, %cst_19 [1] : vector<32x64xf32> to vector<32xf32>
    %51 = vector.shape_cast %50 : vector<32xf32> to vector<32x1xf32>
    %52 = vector.broadcast %51 : vector<32x1xf32> to vector<32x64xf32>
    %53 = arith.subf %49, %52 : vector<32x64xf32>
    %54 = math.exp %53 : vector<32x64xf32>
    %cst_20 = arith.constant dense<0.000000e+00> : vector<32x64xf32>
    %55 = tpu.matmul %54, %33, %cst_20 {dimension_numbers = #tpu.dot_dimension_numbers<[1], [0], [0], [1], [0, 0, 1, 1], [], []>} : vector<32x64xf32>, vector<64x64xf32>, vector<32x64xf32> -> vector<32x64xf32>
    %56 = tpu.reciprocal %55 {approx = true} : vector<32x64xf32> -> vector<32x64xf32>
    %57 = arith.mulf %54, %56 : vector<32x64xf32>
    %58 = vector.extract_strided_slice %31 {offsets = [0, 128], sizes = [32, 128], strides = [1, 1]} : vector<64x256xf32> to vector<32x128xf32>
    %59 = vector.extract_strided_slice %58 {offsets = [0, 0], sizes = [32, 64], strides = [1, 1]} : vector<32x128xf32> to vector<32x64xf32>
    %60 = vector.extract_strided_slice %58 {offsets = [0, 64], sizes = [32, 64], strides = [1, 1]} : vector<32x128xf32> to vector<32x64xf32>
    %61 = tpu.concatenate %59, %60 in 0 : vector<32x64xf32>, vector<32x64xf32> -> vector<64x64xf32>
    %62 = arith.truncf %57 : vector<32x64xf32> to vector<32x64xbf16>
    %63 = arith.truncf %61 : vector<64x64xf32> to vector<64x64xbf16>
    %cst_21 = arith.constant dense<0.000000e+00> : vector<32x64xf32>
    %64 = tpu.matmul %62, %63, %cst_21 {dimension_numbers = #tpu.dot_dimension_numbers<[1], [0], [0], [1], [0, 0, 1, 1], [], []>} : vector<32x64xbf16>, vector<64x64xbf16>, vector<32x64xf32> -> vector<32x64xf32>
    %65 = vector.extract_strided_slice %31 {offsets = [32, 0], sizes = [32, 32], strides = [1, 1]} : vector<64x256xf32> to vector<32x32xf32>
    %66 = vector.extract_strided_slice %31 {offsets = [32, 64], sizes = [32, 32], strides = [1, 1]} : vector<64x256xf32> to vector<32x32xf32>
    %67 = arith.truncf %65 : vector<32x32xf32> to vector<32x32xbf16>
    %68 = tpu.transpose %66, [1, 0] : vector<32x32xf32> -> vector<32x32xf32>
    %69 = arith.truncf %68 : vector<32x32xf32> to vector<32x32xbf16>
    %cst_22 = arith.constant dense<0.000000e+00> : vector<32x32xf32>
    %70 = tpu.matmul %67, %69, %cst_22 {dimension_numbers = #tpu.dot_dimension_numbers<[1], [0], [0], [1], [0, 0, 1, 1], [], []>} : vector<32x32xbf16>, vector<32x32xbf16>, vector<32x32xf32> -> vector<32x32xf32>
    %71 = vector.extract_strided_slice %31 {offsets = [32, 32], sizes = [32, 32], strides = [1, 1]} : vector<64x256xf32> to vector<32x32xf32>
    %72 = vector.extract_strided_slice %31 {offsets = [32, 96], sizes = [32, 32], strides = [1, 1]} : vector<64x256xf32> to vector<32x32xf32>
    %73 = arith.truncf %71 : vector<32x32xf32> to vector<32x32xbf16>
    %74 = tpu.transpose %72, [1, 0] : vector<32x32xf32> -> vector<32x32xf32>
    %75 = arith.truncf %74 : vector<32x32xf32> to vector<32x32xbf16>
    %cst_23 = arith.constant dense<0.000000e+00> : vector<32x32xf32>
    %76 = tpu.matmul %73, %75, %cst_23 {dimension_numbers = #tpu.dot_dimension_numbers<[1], [0], [0], [1], [0, 0, 1, 1], [], []>} : vector<32x32xbf16>, vector<32x32xbf16>, vector<32x32xf32> -> vector<32x32xf32>
    %77 = tpu.concatenate %70, %76 in 1 : vector<32x32xf32>, vector<32x32xf32> -> vector<32x64xf32>
    %cst_24 = arith.constant 0.176776692 : f32
    %78 = vector.broadcast %cst_24 : f32 to vector<32x64xf32>
    %79 = arith.mulf %77, %78 : vector<32x64xf32>
    %80 = arith.addf %79, %32 : vector<32x64xf32>
    %cst_25 = arith.constant dense<0xFF800000> : vector<32xf32>
    %81 = vector.multi_reduction <maximumf>, %80, %cst_25 [1] : vector<32x64xf32> to vector<32xf32>
    %82 = vector.shape_cast %81 : vector<32xf32> to vector<32x1xf32>
    %83 = vector.broadcast %82 : vector<32x1xf32> to vector<32x64xf32>
    %84 = arith.subf %80, %83 : vector<32x64xf32>
    %85 = math.exp %84 : vector<32x64xf32>
    %cst_26 = arith.constant dense<0.000000e+00> : vector<32x64xf32>
    %86 = tpu.matmul %85, %33, %cst_26 {dimension_numbers = #tpu.dot_dimension_numbers<[1], [0], [0], [1], [0, 0, 1, 1], [], []>} : vector<32x64xf32>, vector<64x64xf32>, vector<32x64xf32> -> vector<32x64xf32>
    %87 = tpu.reciprocal %86 {approx = true} : vector<32x64xf32> -> vector<32x64xf32>
    %88 = arith.mulf %85, %87 : vector<32x64xf32>
    %89 = vector.extract_strided_slice %31 {offsets = [32, 128], sizes = [32, 128], strides = [1, 1]} : vector<64x256xf32> to vector<32x128xf32>
    %90 = vector.extract_strided_slice %89 {offsets = [0, 0], sizes = [32, 64], strides = [1, 1]} : vector<32x128xf32> to vector<32x64xf32>
    %91 = vector.extract_strided_slice %89 {offsets = [0, 64], sizes = [32, 64], strides = [1, 1]} : vector<32x128xf32> to vector<32x64xf32>
    %92 = tpu.concatenate %90, %91 in 0 : vector<32x64xf32>, vector<32x64xf32> -> vector<64x64xf32>
    %93 = arith.truncf %88 : vector<32x64xf32> to vector<32x64xbf16>
    %94 = arith.truncf %92 : vector<64x64xf32> to vector<64x64xbf16>
    %cst_27 = arith.constant dense<0.000000e+00> : vector<32x64xf32>
    %95 = tpu.matmul %93, %94, %cst_27 {dimension_numbers = #tpu.dot_dimension_numbers<[1], [0], [0], [1], [0, 0, 1, 1], [], []>} : vector<32x64xbf16>, vector<64x64xbf16>, vector<32x64xf32> -> vector<32x64xf32>
    %96 = tpu.concatenate %64, %95 in 0 : vector<32x64xf32>, vector<32x64xf32> -> vector<64x64xf32>
    %97 = tpu.concatenate %57, %88 in 0 : vector<32x64xf32>, vector<32x64xf32> -> vector<64x64xf32>
    %98 = arith.addf %0, %96 : vector<64x64xf32>
    %c0_28 = arith.constant 0 : index
    %c0_29 = arith.constant 0 : index
    %99 = vector.load %arg5[%c0_28, %c0_29] : memref<1x64xf32, #tpu.memory_space<vmem>>, vector<1x64xf32>
    %100 = vector.shape_cast %99 : vector<1x64xf32> to vector<64xf32>
    %101 = vector.shape_cast %100 : vector<64xf32> to vector<1x64xf32>
    %102 = vector.broadcast %101 : vector<1x64xf32> to vector<64x64xf32>
    %103 = arith.addf %98, %102 : vector<64x64xf32>
    %c0_30 = arith.constant 0 : index
    %c0_31 = arith.constant 0 : index
    %104 = vector.load %arg6[%c0_30, %c0_31] : memref<1x64xf32, #tpu.memory_space<vmem>>, vector<1x64xf32>
    %105 = vector.shape_cast %104 : vector<1x64xf32> to vector<64xf32>
    %c0_32 = arith.constant 0 : index
    %c0_33 = arith.constant 0 : index
    %106 = vector.load %arg7[%c0_32, %c0_33] : memref<1x64xf32, #tpu.memory_space<vmem>>, vector<1x64xf32>
    %107 = vector.shape_cast %106 : vector<1x64xf32> to vector<64xf32>
    %cst_34 = arith.constant dense<0.000000e+00> : vector<64xf32>
    %108 = vector.multi_reduction <add>, %103, %cst_34 [1] : vector<64x64xf32> to vector<64xf32>
    %109 = vector.shape_cast %108 : vector<64xf32> to vector<64x1xf32>
    %cst_35 = arith.constant 6.400000e+01 : f32
    %110 = vector.broadcast %cst_35 : f32 to vector<64x1xf32>
    %111 = arith.divf %109, %110 : vector<64x1xf32>
    %112 = vector.broadcast %111 : vector<64x1xf32> to vector<64x64xf32>
    %113 = arith.subf %103, %112 : vector<64x64xf32>
    %114 = arith.mulf %113, %113 : vector<64x64xf32>
    %cst_36 = arith.constant dense<0.000000e+00> : vector<64xf32>
    %115 = vector.multi_reduction <add>, %114, %cst_36 [1] : vector<64x64xf32> to vector<64xf32>
    %116 = vector.shape_cast %115 : vector<64xf32> to vector<64x1xf32>
    %cst_37 = arith.constant 6.400000e+01 : f32
    %117 = vector.broadcast %cst_37 : f32 to vector<64x1xf32>
    %118 = arith.divf %116, %117 : vector<64x1xf32>
    %119 = vector.broadcast %111 : vector<64x1xf32> to vector<64x64xf32>
    %120 = arith.subf %103, %119 : vector<64x64xf32>
    %cst_38 = arith.constant 9.99999974E-6 : f32
    %121 = vector.broadcast %cst_38 : f32 to vector<64x1xf32>
    %122 = arith.addf %118, %121 : vector<64x1xf32>
    %123 = math.rsqrt %122 : vector<64x1xf32>
    %124 = vector.broadcast %123 : vector<64x1xf32> to vector<64x64xf32>
    %125 = arith.mulf %120, %124 : vector<64x64xf32>
    %126 = vector.shape_cast %105 : vector<64xf32> to vector<1x64xf32>
    %127 = vector.broadcast %126 : vector<1x64xf32> to vector<64x64xf32>
    %128 = arith.mulf %125, %127 : vector<64x64xf32>
    %129 = vector.shape_cast %107 : vector<64xf32> to vector<1x64xf32>
    %130 = vector.broadcast %129 : vector<1x64xf32> to vector<64x64xf32>
    %131 = arith.addf %128, %130 : vector<64x64xf32>
    %132 = arith.truncf %131 : vector<64x64xf32> to vector<64x64xbf16>
    %c0_39 = arith.constant 0 : index
    %c0_40 = arith.constant 0 : index
    %133 = vector.load %arg8[%c0_39, %c0_40] : memref<64x256xbf16, #tpu.memory_space<vmem>>, vector<64x256xbf16>
    %cst_41 = arith.constant dense<0.000000e+00> : vector<64x256xf32>
    %134 = tpu.matmul %132, %133, %cst_41 {dimension_numbers = #tpu.dot_dimension_numbers<[1], [0], [0], [1], [0, 0, 1, 1], [], []>} : vector<64x64xbf16>, vector<64x256xbf16>, vector<64x256xf32> -> vector<64x256xf32>
    %c0_42 = arith.constant 0 : index
    %c0_43 = arith.constant 0 : index
    %135 = vector.load %arg9[%c0_42, %c0_43] : memref<1x256xf32, #tpu.memory_space<vmem>>, vector<1x256xf32>
    %136 = vector.shape_cast %135 : vector<1x256xf32> to vector<256xf32>
    %137 = vector.shape_cast %136 : vector<256xf32> to vector<1x256xf32>
    %138 = vector.broadcast %137 : vector<1x256xf32> to vector<64x256xf32>
    %139 = arith.addf %134, %138 : vector<64x256xf32>
    %cst_44 = arith.constant 0.000000e+00 : f32
    %140 = vector.broadcast %cst_44 : f32 to vector<64x256xf32>
    %141 = arith.maximumf %139, %140 : vector<64x256xf32>
    %142 = arith.truncf %141 : vector<64x256xf32> to vector<64x256xbf16>
    %c0_45 = arith.constant 0 : index
    %c0_46 = arith.constant 0 : index
    %143 = vector.load %arg10[%c0_45, %c0_46] : memref<256x64xbf16, #tpu.memory_space<vmem>>, vector<256x64xbf16>
    %cst_47 = arith.constant dense<0.000000e+00> : vector<64x64xf32>
    %144 = tpu.matmul %142, %143, %cst_47 {dimension_numbers = #tpu.dot_dimension_numbers<[1], [0], [0], [1], [0, 0, 1, 1], [], []>} : vector<64x256xbf16>, vector<256x64xbf16>, vector<64x64xf32> -> vector<64x64xf32>
    %c0_48 = arith.constant 0 : index
    %c0_49 = arith.constant 0 : index
    %145 = vector.load %arg11[%c0_48, %c0_49] : memref<1x64xf32, #tpu.memory_space<vmem>>, vector<1x64xf32>
    %146 = vector.shape_cast %145 : vector<1x64xf32> to vector<64xf32>
    %147 = vector.shape_cast %146 : vector<64xf32> to vector<1x64xf32>
    %148 = vector.broadcast %147 : vector<1x64xf32> to vector<64x64xf32>
    %149 = arith.addf %144, %148 : vector<64x64xf32>
    %150 = arith.addf %103, %149 : vector<64x64xf32>
    %151 = tpu.concatenate %150, %97 in 1 : vector<64x64xf32>, vector<64x64xf32> -> vector<64x128xf32>
    %c0_50 = arith.constant 0 : index
    %c0_51 = arith.constant 0 : index
    %152 = vector.load %arg14[%c0_50, %c0_51] : memref<64x128xf32, #tpu.memory_space<vmem>>, vector<64x128xf32>
    tpu.vector_store %arg14[%c0_50, %c0_51], %151 {strides = array<i32>} : memref<64x128xf32, #tpu.memory_space<vmem>>, vector<64x128xf32>,
    return
  }
  func.func @transform_0(%arg0: i32) -> (i32, i32) {
    %c0_i32 = arith.constant 0 : i32
    %c0_i32_0 = arith.constant 0 : i32
    return %arg0, %c0_i32 : i32, i32
  }
  func.func @transform_1(%arg0: i32) -> (i32, i32) {
    %c0_i32 = arith.constant 0 : i32
    %c0_i32_0 = arith.constant 0 : i32
    %c0_i32_1 = arith.constant 0 : i32
    return %c0_i32, %c0_i32_0 : i32, i32
  }
  func.func @transform_2(%arg0: i32) -> (i32, i32) {
    %c0_i32 = arith.constant 0 : i32
    %c0_i32_0 = arith.constant 0 : i32
    %c0_i32_1 = arith.constant 0 : i32
    return %c0_i32, %c0_i32_0 : i32, i32
  }
  func.func @transform_3(%arg0: i32) -> (i32, i32) {
    %c0_i32 = arith.constant 0 : i32
    %c0_i32_0 = arith.constant 0 : i32
    %c0_i32_1 = arith.constant 0 : i32
    return %c0_i32, %c0_i32_0 : i32, i32
  }
  func.func @transform_4(%arg0: i32) -> (i32, i32) {
    %c0_i32 = arith.constant 0 : i32
    %c0_i32_0 = arith.constant 0 : i32
    %c0_i32_1 = arith.constant 0 : i32
    return %c0_i32, %c0_i32_0 : i32, i32
  }
  func.func @transform_5(%arg0: i32) -> (i32, i32) {
    %c0_i32 = arith.constant 0 : i32
    %c0_i32_0 = arith.constant 0 : i32
    %c0_i32_1 = arith.constant 0 : i32
    return %c0_i32, %c0_i32_0 : i32, i32
  }
  func.func @transform_6(%arg0: i32) -> (i32, i32) {
    %c0_i32 = arith.constant 0 : i32
    %c0_i32_0 = arith.constant 0 : i32
    %c0_i32_1 = arith.constant 0 : i32
    return %c0_i32, %c0_i32_0 : i32, i32
  }
  func.func @transform_7(%arg0: i32) -> (i32, i32) {
    %c0_i32 = arith.constant 0 : i32
    %c0_i32_0 = arith.constant 0 : i32
    %c0_i32_1 = arith.constant 0 : i32
    return %c0_i32, %c0_i32_0 : i32, i32
  }
  func.func @transform_8(%arg0: i32) -> (i32, i32) {
    %c0_i32 = arith.constant 0 : i32
    %c0_i32_0 = arith.constant 0 : i32
    %c0_i32_1 = arith.constant 0 : i32
    return %c0_i32, %c0_i32_0 : i32, i32
  }
  func.func @transform_9(%arg0: i32) -> (i32, i32) {
    %c0_i32 = arith.constant 0 : i32
    %c0_i32_0 = arith.constant 0 : i32
    %c0_i32_1 = arith.constant 0 : i32
    return %c0_i32, %c0_i32_0 : i32, i32
  }
  func.func @transform_10(%arg0: i32) -> (i32, i32) {
    %c0_i32 = arith.constant 0 : i32
    %c0_i32_0 = arith.constant 0 : i32
    %c0_i32_1 = arith.constant 0 : i32
    return %c0_i32, %c0_i32_0 : i32, i32
  }
  func.func @transform_11(%arg0: i32) -> (i32, i32) {
    %c0_i32 = arith.constant 0 : i32
    %c0_i32_0 = arith.constant 0 : i32
    %c0_i32_1 = arith.constant 0 : i32
    return %c0_i32, %c0_i32_0 : i32, i32
  }
  func.func @transform_12(%arg0: i32) -> (i32, i32) {
    %c0_i32 = arith.constant 0 : i32
    %c0_i32_0 = arith.constant 0 : i32
    %c0_i32_1 = arith.constant 0 : i32
    return %c0_i32, %c0_i32_0 : i32, i32
  }
  func.func @transform_13(%arg0: i32) -> (i32, i32) {
    %c0_i32 = arith.constant 0 : i32
    %c0_i32_0 = arith.constant 0 : i32
    return %arg0, %c0_i32 : i32, i32
  }
}

</mosaic_0001>

<llo_original>
// kernel: tpu_custom_call.1
$region0: #{tpu_custom_call.1}
  #allocation0 [shape = 'u32[]', space=smem, size = 0x4, offset = 0x4, fixed_abs, tag = 'smem constant byte address 0x4 - core index']
  #allocation1 [shape = 'u32[144,128]{1,0:T(1,128)}', space=vmem, size = 0x12000, scoped, tag = 'internal scratch']
  %s0 = inlined_call_operand.vmem [shape: f32[64,64], index: 0, kind: input, shape index: {}]
  %s1 = inlined_call_operand.hbm [shape: f32[1,64], index: 1, kind: input, shape index: {}]
  %s2 = inlined_call_operand.hbm [shape: f32[1,64], index: 2, kind: input, shape index: {}]
  %s3 = inlined_call_operand.vmem [shape: bf16[64,256], index: 3, kind: input, shape index: {}]
  %s4 = inlined_call_operand.hbm [shape: f32[1,64], index: 4, kind: input, shape index: {}]
  %s5 = inlined_call_operand.hbm [shape: f32[1,64], index: 5, kind: input, shape index: {}]
  %s6 = inlined_call_operand.hbm [shape: f32[1,64], index: 6, kind: input, shape index: {}]
  %s7 = inlined_call_operand.vmem [shape: bf16[64,256], index: 7, kind: input, shape index: {}]
  %s8 = inlined_call_operand.vmem [shape: f32[1,256], index: 8, kind: input, shape index: {}]
  %s9 = inlined_call_operand.vmem [shape: bf16[256,64], index: 9, kind: input, shape index: {}]
  %s10 = inlined_call_operand.vmem [shape: f32[1,64], index: 10, kind: input, shape index: {}]
  %s11 = inlined_call_operand.vmem [shape: f32[32,64], index: 11, kind: input, shape index: {}]
  %s12 = inlined_call_operand.hbm [shape: f32[64,64], index: 12, kind: input, shape index: {}]
  %s13 = inlined_call_operand.hbm [shape: f32[64,128], index: 13, kind: output, shape index: {}]
  %s14 = sld [smem:[#allocation0]]
  $region86: #{tpu_custom_call.1} parent=0
    _
  %s16 = ssub.s32 1, %s14
  %s17 = scalar_select 0, %s16, %s14
  $region1: #{tpu_custom_call.1} parent=0
    #allocation2 [shape = 'u8[512]{0}', space=vmem, size = 0x400, scoped, tag = 'input window, operand 1, single buffered']
    #allocation3 [shape = 's32[1]{0}', space=sflag, size = 0x4, scoped, tag = 'scoped memory for tpu_custom_call.1']
    #allocation4 [shape = 's32[1]{0}', space=sflag, size = 0x4, scoped, tag = 'scoped memory for tpu_custom_call.1']
    #allocation5 [shape = 'u8[512]{0}', space=vmem, size = 0x400, scoped, tag = 'input window, operand 2, single buffered']
    #allocation6 [shape = 's32[1]{0}', space=sflag, size = 0x4, scoped, tag = 'scoped memory for tpu_custom_call.1']
    #allocation7 [shape = 'u8[512]{0}', space=vmem, size = 0x400, scoped, tag = 'input window, operand 4, single buffered']
    #allocation8 [shape = 'u8[512]{0}', space=vmem, size = 0x400, scoped, tag = 'input window, operand 5, single buffered']
    #allocation9 [shape = 's32[1]{0}', space=sflag, size = 0x4, scoped, tag = 'scoped memory for tpu_custom_call.1']
    #allocation10 [shape = 'u8[512]{0}', space=vmem, size = 0x400, scoped, tag = 'input window, operand 6, single buffered']
    #allocation11 [shape = 'u8[32768]{0}', space=vmem, size = 0x8000, scoped, tag = 'input window, operand 12, single buffered']
    #allocation12 [shape = 's32[1]{0}', space=sflag, size = 0x4, scoped, tag = 'scoped memory for tpu_custom_call.1']
    #allocation13 [shape = 'u8[32768]{0}', space=vmem, size = 0x8000, scoped, tag = 'output window, operand 0, single buffered']
    %18 = vsyncpa [#allocation3], 0
    %19 = vsyncpa [#allocation6], 0
    %20 = vsyncpa [#allocation9], 0
    %21 = vsyncpa [#allocation12], 0
    %22 = vsyncpa [#allocation4], 0
    // Predicated region
    $region2: #{tpu_custom_call.1} parent=1 // pred_check
      _
    $region3: #{tpu_custom_call.1} parent=1 // pred_check_branch
      %24 = sbr.rel (0) target = $region5
    $region4: #{tpu_custom_call.1} parent=1 // pred_region
      _
    $region5: #{tpu_custom_call.1} parent=1 // pred_fallthru
      _
    // Predicated region
    $region6: #{tpu_custom_call.1} parent=1 // pred_check
      _
    $region7: #{tpu_custom_call.1} parent=1 // pred_check_branch
      %26 = sbr.rel (0) target = $region9
    $region8: #{tpu_custom_call.1} parent=1 // pred_region
      %s28 = ssub.s32 16, 16
      %29 = vsyncadd [#allocation3], %s28
      %s31 = sshll.u32 [#allocation2], 4
      %s32 = int_to_ptr.vmem [resolvable:$true] %s31
      %34 = dma.hbm_to_vmem [thread:$0]  %s1, 16, %s32, [#allocation3]
    $region9: #{tpu_custom_call.1} parent=1 // pred_fallthru
      _
    // Predicated region
    $region10: #{tpu_custom_call.1} parent=1 // pred_check
      _
    $region11: #{tpu_custom_call.1} parent=1 // pred_check_branch
      %36 = sbr.rel (0) target = $region13
    $region12: #{tpu_custom_call.1} parent=1 // pred_region
      %s38 = ssub.s32 16, 16
      %39 = vsyncadd [#allocation6], %s38
      %s41 = sshll.u32 [#allocation5], 4
      %s42 = int_to_ptr.vmem [resolvable:$true] %s41
      %44 = dma.hbm_to_vmem [thread:$0]  %s2, 16, %s42, [#allocation6]
    $region13: #{tpu_custom_call.1} parent=1 // pred_fallthru
      _
    // Predicated region
    $region14: #{tpu_custom_call.1} parent=1 // pred_check
      _
    $region15: #{tpu_custom_call.1} parent=1 // pred_check_branch
      %46 = sbr.rel (0) target = $region17
    $region16: #{tpu_custom_call.1} parent=1 // pred_region
      _
    $region17: #{tpu_custom_call.1} parent=1 // pred_fallthru
      _
    // Predicated region
    $region18: #{tpu_custom_call.1} parent=1 // pred_check
      _
    $region19: #{tpu_custom_call.1} parent=1 // pred_check_branch
      %48 = sbr.rel (0) target = $region21
    $region20: #{tpu_custom_call.1} parent=1 // pred_region
      %s50 = ssub.s32 16, 16
      %51 = vsyncadd [#allocation6], %s50
      %s53 = sshll.u32 [#allocation7], 4
      %s54 = int_to_ptr.vmem [resolvable:$true] %s53
      %56 = dma.hbm_to_vmem [thread:$0]  %s4, 16, %s54, [#allocation6]
    $region21: #{tpu_custom_call.1} parent=1 // pred_fallthru
      _
    // Predicated region
    $region22: #{tpu_custom_call.1} parent=1 // pred_check
      _
    $region23: #{tpu_custom_call.1} parent=1 // pred_check_branch
      %58 = sbr.rel (0) target = $region25
    $region24: #{tpu_custom_call.1} parent=1 // pred_region
      %s60 = ssub.s32 16, 16
      %61 = vsyncadd [#allocation9], %s60
      %s63 = sshll.u32 [#allocation8], 4
      %s64 = int_to_ptr.vmem [resolvable:$true] %s63
      %66 = dma.hbm_to_vmem [thread:$0]  %s5, 16, %s64, [#allocation9]
    $region25: #{tpu_custom_call.1} parent=1 // pred_fallthru
      _
    // Predicated region
    $region26: #{tpu_custom_call.1} parent=1 // pred_check
      _
    $region27: #{tpu_custom_call.1} parent=1 // pred_check_branch
      %68 = sbr.rel (0) target = $region29
    $region28: #{tpu_custom_call.1} parent=1 // pred_region
      %s70 = ssub.s32 16, 16
      %71 = vsyncadd [#allocation9], %s70
      %s73 = sshll.u32 [#allocation10], 4
      %s74 = int_to_ptr.vmem [resolvable:$true] %s73
      %76 = dma.hbm_to_vmem [thread:$0]  %s6, 16, %s74, [#allocation9]
    $region29: #{tpu_custom_call.1} parent=1 // pred_fallthru
      _
    // Predicated region
    $region30: #{tpu_custom_call.1} parent=1 // pred_check
      _
    $region31: #{tpu_custom_call.1} parent=1 // pred_check_branch
      %78 = sbr.rel (0) target = $region33
    $region32: #{tpu_custom_call.1} parent=1 // pred_region
      _
    $region33: #{tpu_custom_call.1} parent=1 // pred_fallthru
      _
    // Predicated region
    $region34: #{tpu_custom_call.1} parent=1 // pred_check
      _
    $region35: #{tpu_custom_call.1} parent=1 // pred_check_branch
      %80 = sbr.rel (0) target = $region37
    $region36: #{tpu_custom_call.1} parent=1 // pred_region
      _
    $region37: #{tpu_custom_call.1} parent=1 // pred_fallthru
      _
    // Predicated region
    $region38: #{tpu_custom_call.1} parent=1 // pred_check
      _
    $region39: #{tpu_custom_call.1} parent=1 // pred_check_branch
      %82 = sbr.rel (0) target = $region41
    $region40: #{tpu_custom_call.1} parent=1 // pred_region
      _
    $region41: #{tpu_custom_call.1} parent=1 // pred_fallthru
      _
    // Predicated region
    $region42: #{tpu_custom_call.1} parent=1 // pred_check
      _
    $region43: #{tpu_custom_call.1} parent=1 // pred_check_branch
      %84 = sbr.rel (0) target = $region45
    $region44: #{tpu_custom_call.1} parent=1 // pred_region
      _
    $region45: #{tpu_custom_call.1} parent=1 // pred_fallthru
      _
    // Predicated region
    $region46: #{tpu_custom_call.1} parent=1 // pred_check
      _
    $region47: #{tpu_custom_call.1} parent=1 // pred_check_branch
      %86 = sbr.rel (0) target = $region49
    $region48: #{tpu_custom_call.1} parent=1 // pred_region
      _
    $region49: #{tpu_custom_call.1} parent=1 // pred_fallthru
      _
    // Predicated region
    $region50: #{tpu_custom_call.1} parent=1 // pred_check
      _
    $region51: #{tpu_custom_call.1} parent=1 // pred_check_branch
      %88 = sbr.rel (0) target = $region53
    $region52: #{tpu_custom_call.1} parent=1 // pred_region
      %s90 = ssub.s32 1024, 1024
      %91 = vsyncadd [#allocation12], %s90
      %s92 = sshll.u32 [#allocation11], 4
      %s93 = int_to_ptr.vmem [resolvable:$true] %s92
      %98 = dma.hbm_to_vmem [thread:$0]  %s12, 1024, %s93, [#allocation12], 128, 128, 8
    $region53: #{tpu_custom_call.1} parent=1 // pred_fallthru
      _
    // Predicated region
    $region54: #{tpu_custom_call.1} parent=1 // pred_check
      _
    $region55: #{tpu_custom_call.1} parent=1 // pred_check_branch
      %100 = sbr.rel (0) target = $region57
    $region56: #{tpu_custom_call.1} parent=1 // pred_region
      %101 = dma.done [#allocation3], 16
    $region57: #{tpu_custom_call.1} parent=1 // pred_fallthru
      _
    // Predicated region
    $region58: #{tpu_custom_call.1} parent=1 // pred_check
      _
    $region59: #{tpu_custom_call.1} parent=1 // pred_check_branch
      %103 = sbr.rel (0) target = $region61
    $region60: #{tpu_custom_call.1} parent=1 // pred_region
      %104 = dma.done [#allocation6], 16
    $region61: #{tpu_custom_call.1} parent=1 // pred_fallthru
      _
    // Predicated region
    $region62: #{tpu_custom_call.1} parent=1 // pred_check
      _
    $region63: #{tpu_custom_call.1} parent=1 // pred_check_branch
      %106 = sbr.rel (0) target = $region65
    $region64: #{tpu_custom_call.1} parent=1 // pred_region
      %107 = dma.done [#allocation6], 16
    $region65: #{tpu_custom_call.1} parent=1 // pred_fallthru
      _
    // Predicated region
    $region66: #{tpu_custom_call.1} parent=1 // pred_check
      _
    $region67: #{tpu_custom_call.1} parent=1 // pred_check_branch
      %109 = sbr.rel (0) target = $region69
    $region68: #{tpu_custom_call.1} parent=1 // pred_region
      %110 = dma.done [#allocation9], 16
    $region69: #{tpu_custom_call.1} parent=1 // pred_fallthru
      _
    // Predicated region
    $region70: #{tpu_custom_call.1} parent=1 // pred_check
      _
    $region71: #{tpu_custom_call.1} parent=1 // pred_check_branch
      %112 = sbr.rel (0) target = $region73
    $region72: #{tpu_custom_call.1} parent=1 // pred_region
      %113 = dma.done [#allocation9], 16
    $region73: #{tpu_custom_call.1} parent=1 // pred_fallthru
      _
    // Predicated region
    $region74: #{tpu_custom_call.1} parent=1 // pred_check
      _
    $region75: #{tpu_custom_call.1} parent=1 // pred_check_branch
      %115 = sbr.rel (0) target = $region77
    $region76: #{tpu_custom_call.1} parent=1 // pred_region
      %116 = dma.done [#allocation12], 1024
    $region77: #{tpu_custom_call.1} parent=1 // pred_fallthru
      _
    %v118 = vld [vmem:[%s0] sm:$0xff]
    %v119 = vld [vmem:[%s0 + $0x8] sm:$0xff]
    %v120 = vld [vmem:[%s0 + $0x10] sm:$0xff]
    %v121 = vld [vmem:[%s0 + $0x18] sm:$0xff]
    %v122 = vld [vmem:[%s0 + $0x20] sm:$0xff]
    %v123 = vld [vmem:[%s0 + $0x28] sm:$0xff]
    %v124 = vld [vmem:[%s0 + $0x30] sm:$0xff]
    %v125 = vld [vmem:[%s0 + $0x38] sm:$0xff]
    %v126 = vld [vmem:[#allocation2] sm:$0x1]
    %v127 = vld [vmem:[#allocation5] sm:$0x1]
    %vm128 = vcmask 523264
    %v129 = vsel %vm128, %v118, 0.0
    %130 = vadd.xlane.f32.xlu0 %v129
    %v131 = vpop.xlane.xlu0 %130
    %v132 = vsel %vm128, %v119, 0.0
    %133 = vadd.xlane.f32.xlu0 %v132
    %v134 = vpop.xlane.xlu0 %133
    %v135 = vsel %vm128, %v120, 0.0
    %136 = vadd.xlane.f32.xlu0 %v135
    %v137 = vpop.xlane.xlu0 %136
    %v138 = vsel %vm128, %v121, 0.0
    %139 = vadd.xlane.f32.xlu0 %v138
    %v140 = vpop.xlane.xlu0 %139
    %v141 = vsel %vm128, %v122, 0.0
    %142 = vadd.xlane.f32.xlu0 %v141
    %v143 = vpop.xlane.xlu0 %142
    %v144 = vsel %vm128, %v123, 0.0
    %145 = vadd.xlane.f32.xlu0 %v144
    %v146 = vpop.xlane.xlu0 %145
    %v147 = vsel %vm128, %v124, 0.0
    %148 = vadd.xlane.f32.xlu0 %v147
    %v149 = vpop.xlane.xlu0 %148
    %v150 = vsel %vm128, %v125, 0.0
    %151 = vadd.xlane.f32.xlu0 %v150
    %v152 = vpop.xlane.xlu0 %151
    %v153 = vrcp.pop 64.0
    %v154 = vmul.f32 %v131, %v153
    %v155 = vmul.f32 %v134, %v153
    %v156 = vmul.f32 %v137, %v153
    %v157 = vmul.f32 %v140, %v153
    %v158 = vmul.f32 %v143, %v153
    %v159 = vmul.f32 %v146, %v153
    %v160 = vmul.f32 %v149, %v153
    %v161 = vmul.f32 %v152, %v153
    %v162 = vsub.f32 %v118, %v154
    %v163 = vsub.f32 %v119, %v155
    %v164 = vsub.f32 %v120, %v156
    %v165 = vsub.f32 %v121, %v157
    %v166 = vsub.f32 %v122, %v158
    %v167 = vsub.f32 %v123, %v159
    %v168 = vsub.f32 %v124, %v160
    %v169 = vsub.f32 %v125, %v161
    %v170 = vmul.f32 %v162, %v162
    %v171 = vmul.f32 %v163, %v163
    %v172 = vmul.f32 %v164, %v164
    %v173 = vmul.f32 %v165, %v165
    %v174 = vmul.f32 %v166, %v166
    %v175 = vmul.f32 %v167, %v167
    %v176 = vmul.f32 %v168, %v168
    %v177 = vmul.f32 %v169, %v169
    %v178 = vsel %vm128, %v170, 0.0
    %179 = vadd.xlane.f32.xlu0 %v178
    %v180 = vpop.xlane.xlu0 %179
    %v181 = vsel %vm128, %v171, 0.0
    %182 = vadd.xlane.f32.xlu0 %v181
    %v183 = vpop.xlane.xlu0 %182
    %v184 = vsel %vm128, %v172, 0.0
    %185 = vadd.xlane.f32.xlu0 %v184
    %v186 = vpop.xlane.xlu0 %185
    %v187 = vsel %vm128, %v173, 0.0
    %188 = vadd.xlane.f32.xlu0 %v187
    %v189 = vpop.xlane.xlu0 %188
    %v190 = vsel %vm128, %v174, 0.0
    %191 = vadd.xlane.f32.xlu0 %v190
    %v192 = vpop.xlane.xlu0 %191
    %v193 = vsel %vm128, %v175, 0.0
    %194 = vadd.xlane.f32.xlu0 %v193
    %v195 = vpop.xlane.xlu0 %194
    %v196 = vsel %vm128, %v176, 0.0
    %197 = vadd.xlane.f32.xlu0 %v196
    %v198 = vpop.xlane.xlu0 %197
    %v199 = vsel %vm128, %v177, 0.0
    %200 = vadd.xlane.f32.xlu0 %v199
    %v201 = vpop.xlane.xlu0 %200
    %v202 = vmul.f32 %v180, %v153
    %v203 = vmul.f32 %v183, %v153
    %v204 = vmul.f32 %v186, %v153
    %v205 = vmul.f32 %v189, %v153
    %v206 = vmul.f32 %v192, %v153
    %v207 = vmul.f32 %v195, %v153
    %v208 = vmul.f32 %v198, %v153
    %v209 = vmul.f32 %v201, %v153
    %v210 = vadd.f32 %v202, 1e-05
    %v211 = vadd.f32 %v203, 1e-05
    %v212 = vadd.f32 %v204, 1e-05
    %v213 = vadd.f32 %v205, 1e-05
    %v214 = vadd.f32 %v206, 1e-05
    %v215 = vadd.f32 %v207, 1e-05
    %v216 = vadd.f32 %v208, 1e-05
    %v217 = vadd.f32 %v209, 1e-05
    %v218 = vrsqrt.pop %v210
    %v219 = vrsqrt.pop %v211
    %v220 = vrsqrt.pop %v212
    %v221 = vrsqrt.pop %v213
    %v222 = vrsqrt.pop %v214
    %v223 = vrsqrt.pop %v215
    %v224 = vrsqrt.pop %v216
    %v225 = vrsqrt.pop %v217
    %v226 = vmul.f32 %v162, %v218
    %v227 = vmul.f32 %v163, %v219
    %v228 = vmul.f32 %v164, %v220
    %v229 = vmul.f32 %v165, %v221
    %v230 = vmul.f32 %v166, %v222
    %v231 = vmul.f32 %v167, %v223
    %v232 = vmul.f32 %v168, %v224
    %v233 = vmul.f32 %v169, %v225
    %v235 = vlaneseq
    %v236 = vshrl.u32 %v235, 7
    %v237 = vsub.s32 0, %v236
    %v238 = vrot.slane %v126, %v237
    %v240 = vmul.f32 %v226, %v238
    %v241 = vmul.f32 %v227, %v238
    %v242 = vmul.f32 %v228, %v238
    %v243 = vmul.f32 %v229, %v238
    %v244 = vmul.f32 %v230, %v238
    %v245 = vmul.f32 %v231, %v238
    %v246 = vmul.f32 %v232, %v238
    %v247 = vmul.f32 %v233, %v238
    %v249 = vlaneseq
    %v250 = vshrl.u32 %v249, 7
    %v251 = vsub.s32 0, %v250
    %v252 = vrot.slane %v127, %v251
    %v254 = vadd.f32 %v240, %v252
    %v255 = vadd.f32 %v241, %v252
    %v256 = vadd.f32 %v242, %v252
    %v257 = vadd.f32 %v243, %v252
    %v258 = vadd.f32 %v244, %v252
    %v259 = vadd.f32 %v245, %v252
    %v260 = vadd.f32 %v246, %v252
    %v261 = vadd.f32 %v247, %v252
    %v262 = vpack.c.bf16 %v255, %v254
    %v263 = vpack.c.bf16 %v257, %v256
    %v264 = vpack.c.bf16 %v259, %v258
    %v265 = vpack.c.bf16 %v261, %v260
    %v266 = vld [vmem:[%s3] sm:$0xff]
    %v267 = vld [vmem:[%s3 + $0x8] sm:$0xff]
    %v268 = vld [vmem:[%s3 + $0x10] sm:$0xff]
    %v269 = vld [vmem:[%s3 + $0x18] sm:$0xff]
    %v270 = vld [vmem:[%s3 + $0x20] sm:$0xff]
    %v271 = vld [vmem:[%s3 + $0x28] sm:$0xff]
    %v272 = vld [vmem:[%s3 + $0x30] sm:$0xff]
    %v273 = vld [vmem:[%s3 + $0x38] sm:$0xff]
    %v282 = vunpack.c.l.b16 %v266
    %v283 = vunpack.c.h.b16 %v266
    %v284 = vunpack.c.l.b16 %v267
    %v285 = vunpack.c.h.b16 %v267
    %v286 = vunpack.c.l.b16 %v268
    %v287 = vunpack.c.h.b16 %v268
    %v288 = vunpack.c.l.b16 %v269
    %v289 = vunpack.c.h.b16 %v269
    %v290 = vunpack.c.l.b16 %v270
    %v291 = vunpack.c.h.b16 %v270
    %v292 = vunpack.c.l.b16 %v271
    %v293 = vunpack.c.h.b16 %v271
    %v294 = vunpack.c.l.b16 %v272
    %v295 = vunpack.c.h.b16 %v272
    %v296 = vunpack.c.l.b16 %v273
    %v297 = vunpack.c.h.b16 %v273
    %v298 = vpack.c.b16 %v284, %v282
    %v299 = vpack.c.b16 %v285, %v283
    %v300 = vpack.c.b16 %v288, %v286
    %v301 = vpack.c.b16 %v289, %v287
    %v302 = vpack.c.b16 %v292, %v290
    %v303 = vpack.c.b16 %v293, %v291
    %v304 = vpack.c.b16 %v296, %v294
    %v305 = vpack.c.b16 %v297, %v295
    %v315 = vsel %vm128, %v262, 0
    %v318 = vsel %vm128, %v263, 0
    %v321 = vsel %vm128, %v264, 0
    %v324 = vsel %vm128, %v265, 0
    %326 = vmatprep.subr.bf16.mxu0 %v299
    %327 = vmatpush1.bf16.msra.mxu0 %v298
    %328 = vmatprep.subr.bf16.mxu0 %v301
    %329 = vmatpush1.bf16.msra.mxu0 %v300
    %330 = vmatprep.subr.bf16.mxu0 %v303
    %331 = vmatpush1.bf16.msra.mxu0 %v302
    %332 = vmatprep.subr.bf16.mxu0 %v305
    %333 = vmatpush1.bf16.msra.mxu0 %v304
    %334 = vmatprep.subr.bf16.mxu0 0
    %335 = vmatpush1.bf16.msra.mxu0 0
    %336 = vmatprep.subr.bf16.mxu0 0
    %337 = vmatpush1.bf16.msra.mxu0 0
    %338 = vmatprep.subr.bf16.mxu0 0
    %339 = vmatpush1.bf16.msra.mxu0 0
    %340 = vmatprep.subr.bf16.mxu0 0
    %341 = vmatpush1.bf16.msra.mxu0 0
    %342 = vmatprep.subr.bf16.mxu0 0
    %343 = vmatpush1.bf16.msra.mxu0 0
    %344 = vmatprep.subr.bf16.mxu0 0
    %345 = vmatpush1.bf16.msra.mxu0 0
    %346 = vmatprep.subr.bf16.mxu0 0
    %347 = vmatpush1.bf16.msra.mxu0 0
    %348 = vmatprep.subr.bf16.mxu0 0
    %349 = vmatpush1.bf16.msra.mxu0 0
    %350 = vmatprep.subr.bf16.mxu0 0
    %351 = vmatpush1.bf16.msra.mxu0 0
    %352 = vmatprep.subr.bf16.mxu0 0
    %353 = vmatpush1.bf16.msra.mxu0 0
    %354 = vmatprep.subr.bf16.mxu0 0
    %355 = vmatpush1.bf16.msra.mxu0 0
    %356 = vmatprep.subr.bf16.mxu0 0
    %357 = vmatpush1.bf16.msra.mxu0 0
    %358 = vmatprep.mubr.bf16.mxu0 0
    %359 = vmatmul.mubr.bf16.gmra.mrb[0].mxu0 %v315
    %v360 = vpop.f32.mrb[0].mxu0
    %v361 = vadd.f32 0.0, %v360
    %v362 = vpop.f32.mrb[0].mxu0
    %v363 = vadd.f32 0.0, %v362
    %v364 = vpop.f32.mrb[0].mxu0
    %v365 = vadd.f32 0.0, %v364
    %v366 = vpop.f32.mrb[0].mxu0
    %v367 = vadd.f32 0.0, %v366
    %368 = vmatprep.mubr.bf16.mxu0 0
    %369 = vmatmul.mubr.bf16.gmra.mrb[0].mxu0 %v318
    %v370 = vpop.f32.mrb[0].mxu0
    %v371 = vadd.f32 0.0, %v370
    %v372 = vpop.f32.mrb[0].mxu0
    %v373 = vadd.f32 0.0, %v372
    %v374 = vpop.f32.mrb[0].mxu0
    %v375 = vadd.f32 0.0, %v374
    %v376 = vpop.f32.mrb[0].mxu0
    %v377 = vadd.f32 0.0, %v376
    %378 = vmatprep.mubr.bf16.mxu0 0
    %379 = vmatmul.mubr.bf16.gmra.mrb[0].mxu0 %v321
    %v380 = vpop.f32.mrb[0].mxu0
    %v381 = vadd.f32 0.0, %v380
    %v382 = vpop.f32.mrb[0].mxu0
    %v383 = vadd.f32 0.0, %v382
    %v384 = vpop.f32.mrb[0].mxu0
    %v385 = vadd.f32 0.0, %v384
    %v386 = vpop.f32.mrb[0].mxu0
    %v387 = vadd.f32 0.0, %v386
    %388 = vmatprep.mubr.bf16.mxu0 0
    %389 = vmatmul.mubr.bf16.gmra.mrb[0].mxu0 %v324
    %v390 = vpop.f32.mrb[0].mxu0
    %v391 = vadd.f32 0.0, %v390
    %v392 = vpop.f32.mrb[0].mxu0
    %v393 = vadd.f32 0.0, %v392
    %v394 = vpop.f32.mrb[0].mxu0
    %v395 = vadd.f32 0.0, %v394
    %v396 = vpop.f32.mrb[0].mxu0
    %v397 = vadd.f32 0.0, %v396
    %398 = vdwg.mxu0
    %v399 = vld [vmem:[%s11] sm:$0xff]
    %v400 = vld [vmem:[%s11 + $0x8] sm:$0xff]
    %v401 = vld [vmem:[%s11 + $0x10] sm:$0xff]
    %v402 = vld [vmem:[%s11 + $0x18] sm:$0xff]
    %v403 = vld [vmem:[#allocation11] sm:$0xff]
    %v404 = vld [vmem:[#allocation11 + $0x8] sm:$0xff]
    %v405 = vld [vmem:[#allocation11 + $0x10] sm:$0xff]
    %v406 = vld [vmem:[#allocation11 + $0x18] sm:$0xff]
    %v407 = vld [vmem:[#allocation11 + $0x20] sm:$0xff]
    %v408 = vld [vmem:[#allocation11 + $0x28] sm:$0xff]
    %v409 = vld [vmem:[#allocation11 + $0x30] sm:$0xff]
    %v410 = vld [vmem:[#allocation11 + $0x38] sm:$0xff]
    %v411 = vpack.c.bf16 %v365, %v361
    %v412 = vpack.c.bf16 %v375, %v371
    %417 = vrot.lane.b32.xlu0 %v361, 64
    %v418 = vpop.permute.xlu0 %417
    %419 = vrot.lane.b32.xlu0 %v365, 64
    %v420 = vpop.permute.xlu0 %419
    %421 = vrot.lane.b32.xlu0 %v371, 64
    %v422 = vpop.permute.xlu0 %421
    %423 = vrot.lane.b32.xlu0 %v375, 64
    %v424 = vpop.permute.xlu0 %423
    %429 = vxpose.xlu0.b32.start [1/16] %v418, 128
    %430 = vxpose.xlu0.b32.cont [2/16] %v420, 128
    %431 = vxpose.xlu0.b32.cont [3/16] %v422, 128
    %432 = vxpose.xlu0.b32.cont [4/16] %v424, 128
    %433 = vxpose.xlu0.b32.cont [5/16] 0.0, 128
    %434 = vxpose.xlu0.b32.cont [6/16] 0.0, 128
    %435 = vxpose.xlu0.b32.cont [7/16] 0.0, 128
    %436 = vxpose.xlu0.b32.cont [8/16] 0.0, 128
    %437 = vxpose.xlu0.b32.cont [9/16] 0.0, 128
    %438 = vxpose.xlu0.b32.cont [10/16] 0.0, 128
    %439 = vxpose.xlu0.b32.cont [11/16] 0.0, 128
    %440 = vxpose.xlu0.b32.cont [12/16] 0.0, 128
    %441 = vxpose.xlu0.b32.cont [13/16] 0.0, 128
    %442 = vxpose.xlu0.b32.cont [14/16] 0.0, 128
    %443 = vxpose.xlu0.b32.cont [15/16] 0.0, 128
    %444 = vxpose.xlu0.b32.end [16/16] 0.0, 128
    %v445 = vpop.trf.xlu0
    %v446 = vpop.trf.xlu0
    %v447 = vpop.trf.xlu0
    %v448 = vpop.trf.xlu0
    %v449 = vpop.trf.xlu0
    %v450 = vpop.trf.xlu0
    %v451 = vpop.trf.xlu0
    %v452 = vpop.trf.xlu0
    %v453 = vpop.trf.xlu0
    %v454 = vpop.trf.xlu0
    %v455 = vpop.trf.xlu0
    %v456 = vpop.trf.xlu0
    %v457 = vpop.trf.xlu0
    %v458 = vpop.trf.xlu0
    %v459 = vpop.trf.xlu0
    %v460 = vpop.trf.xlu0
    %v461 = vpack.c.bf16 %v446, %v445
    %v462 = vpack.c.bf16 %v448, %v447
    %vm463 = vcmask 261120
    %v465 = vsel %vm463, %v411, 0
    %v468 = vsel %vm463, %v412, 0
    %470 = vmatprep.subr.bf16.mxu0 0
    %471 = vmatpush1.bf16.msra.mxu0 %v461
    %472 = vmatprep.subr.bf16.mxu0 0
    %473 = vmatpush1.bf16.msra.mxu0 %v462
    %474 = vmatprep.subr.bf16.mxu0 0
    %475 = vmatpush1.bf16.msra.mxu0 0
    %476 = vmatprep.subr.bf16.mxu0 0
    %477 = vmatpush1.bf16.msra.mxu0 0
    %478 = vmatprep.subr.bf16.mxu0 0
    %479 = vmatpush1.bf16.msra.mxu0 0
    %480 = vmatprep.subr.bf16.mxu0 0
    %481 = vmatpush1.bf16.msra.mxu0 0
    %482 = vmatprep.subr.bf16.mxu0 0
    %483 = vmatpush1.bf16.msra.mxu0 0
    %484 = vmatprep.subr.bf16.mxu0 0
    %485 = vmatpush1.bf16.msra.mxu0 0
    %486 = vmatprep.subr.bf16.mxu0 0
    %487 = vmatpush1.bf16.msra.mxu0 0
    %488 = vmatprep.subr.bf16.mxu0 0
    %489 = vmatpush1.bf16.msra.mxu0 0
    %490 = vmatprep.subr.bf16.mxu0 0
    %491 = vmatpush1.bf16.msra.mxu0 0
    %492 = vmatprep.subr.bf16.mxu0 0
    %493 = vmatpush1.bf16.msra.mxu0 0
    %494 = vmatprep.subr.bf16.mxu0 0
    %495 = vmatpush1.bf16.msra.mxu0 0
    %496 = vmatprep.subr.bf16.mxu0 0
    %497 = vmatpush1.bf16.msra.mxu0 0
    %498 = vmatprep.subr.bf16.mxu0 0
    %499 = vmatpush1.bf16.msra.mxu0 0
    %500 = vmatprep.subr.bf16.mxu0 0
    %501 = vmatpush1.bf16.msra.mxu0 0
    %502 = vmatprep.mubr.bf16.mxu0 0
    %503 = vmatmul.mubr.bf16.gmra.mrb[0].mxu0 %v465
    %v504 = vpop.f32.mrb[0].mxu0
    %v505 = vadd.f32 0.0, %v504
    %v506 = vpop.f32.mrb[0].mxu0
    %v507 = vpop.f32.mrb[0].mxu0
    %v508 = vadd.f32 0.0, %v507
    %v509 = vpop.f32.mrb[0].mxu0
    %510 = vmatprep.mubr.bf16.mxu0 0
    %511 = vmatmul.mubr.bf16.gmra.mrb[0].mxu0 %v468
    %v512 = vpop.f32.mrb[0].mxu0
    %v513 = vadd.f32 0.0, %v512
    %v514 = vpop.f32.mrb[0].mxu0
    %v515 = vpop.f32.mrb[0].mxu0
    %v516 = vadd.f32 0.0, %v515
    %v517 = vpop.f32.mrb[0].mxu0
    %518 = vdwg.mxu0
    %519 = vrot.lane.b32.xlu0 %v361, 32
    %v520 = vpop.permute.xlu0 %519
    %521 = vrot.lane.b32.xlu0 %v365, 32
    %v522 = vpop.permute.xlu0 %521
    %523 = vrot.lane.b32.xlu0 %v371, 32
    %v524 = vpop.permute.xlu0 %523
    %525 = vrot.lane.b32.xlu0 %v375, 32
    %v526 = vpop.permute.xlu0 %525
    %531 = vxpose.xlu0.b32.start [1/16] %v520, 128
    %532 = vxpose.xlu0.b32.cont [2/16] %v522, 128
    %533 = vxpose.xlu0.b32.cont [3/16] %v524, 128
    %534 = vxpose.xlu0.b32.cont [4/16] %v526, 128
    %535 = vxpose.xlu0.b32.cont [5/16] 0.0, 128
    %536 = vxpose.xlu0.b32.cont [6/16] 0.0, 128
    %537 = vxpose.xlu0.b32.cont [7/16] 0.0, 128
    %538 = vxpose.xlu0.b32.cont [8/16] 0.0, 128
    %539 = vxpose.xlu0.b32.cont [9/16] 0.0, 128
    %540 = vxpose.xlu0.b32.cont [10/16] 0.0, 128
    %541 = vxpose.xlu0.b32.cont [11/16] 0.0, 128
    %542 = vxpose.xlu0.b32.cont [12/16] 0.0, 128
    %543 = vxpose.xlu0.b32.cont [13/16] 0.0, 128
    %544 = vxpose.xlu0.b32.cont [14/16] 0.0, 128
    %545 = vxpose.xlu0.b32.cont [15/16] 0.0, 128
    %546 = vxpose.xlu0.b32.end [16/16] 0.0, 128
    %v547 = vpop.trf.xlu0
    %v548 = vpop.trf.xlu0
    %v549 = vpop.trf.xlu0
    %v550 = vpop.trf.xlu0
    %v551 = vpop.trf.xlu0
    %v552 = vpop.trf.xlu0
    %v553 = vpop.trf.xlu0
    %v554 = vpop.trf.xlu0
    %v555 = vpop.trf.xlu0
    %v556 = vpop.trf.xlu0
    %v557 = vpop.trf.xlu0
    %v558 = vpop.trf.xlu0
    %v559 = vpop.trf.xlu0
    %v560 = vpop.trf.xlu0
    %v561 = vpop.trf.xlu0
    %v562 = vpop.trf.xlu0
    %v563 = vpack.c.bf16 %v548, %v547
    %v564 = vpack.c.bf16 %v550, %v549
    %567 = vrot.lane.b32.xlu0 %v411, 96
    %v568 = vpop.permute.xlu0 %567
    %569 = vrot.lane.b32.xlu0 %v412, 96
    %v570 = vpop.permute.xlu0 %569
    %v572 = vsel %vm463, %v568, 0
    %v575 = vsel %vm463, %v570, 0
    %577 = vmatprep.subr.bf16.mxu0 0
    %578 = vmatpush1.bf16.msra.mxu0 %v563
    %579 = vmatprep.subr.bf16.mxu0 0
    %580 = vmatpush1.bf16.msra.mxu0 %v564
    %581 = vmatprep.subr.bf16.mxu0 0
    %582 = vmatpush1.bf16.msra.mxu0 0
    %583 = vmatprep.subr.bf16.mxu0 0
    %584 = vmatpush1.bf16.msra.mxu0 0
    %585 = vmatprep.subr.bf16.mxu0 0
    %586 = vmatpush1.bf16.msra.mxu0 0
    %587 = vmatprep.subr.bf16.mxu0 0
    %588 = vmatpush1.bf16.msra.mxu0 0
    %589 = vmatprep.subr.bf16.mxu0 0
    %590 = vmatpush1.bf16.msra.mxu0 0
    %591 = vmatprep.subr.bf16.mxu0 0
    %592 = vmatpush1.bf16.msra.mxu0 0
    %593 = vmatprep.subr.bf16.mxu0 0
    %594 = vmatpush1.bf16.msra.mxu0 0
    %595 = vmatprep.subr.bf16.mxu0 0
    %596 = vmatpush1.bf16.msra.mxu0 0
    %597 = vmatprep.subr.bf16.mxu0 0
    %598 = vmatpush1.bf16.msra.mxu0 0
    %599 = vmatprep.subr.bf16.mxu0 0
    %600 = vmatpush1.bf16.msra.mxu0 0
    %601 = vmatprep.subr.bf16.mxu0 0
    %602 = vmatpush1.bf16.msra.mxu0 0
    %603 = vmatprep.subr.bf16.mxu0 0
    %604 = vmatpush1.bf16.msra.mxu0 0
    %605 = vmatprep.subr.bf16.mxu0 0
    %606 = vmatpush1.bf16.msra.mxu0 0
    %607 = vmatprep.subr.bf16.mxu0 0
    %608 = vmatpush1.bf16.msra.mxu0 0
    %609 = vmatprep.mubr.bf16.mxu0 0
    %610 = vmatmul.mubr.bf16.gmra.mrb[0].mxu0 %v572
    %v611 = vpop.f32.mrb[0].mxu0
    %v612 = vadd.f32 0.0, %v611
    %v613 = vpop.f32.mrb[0].mxu0
    %v614 = vpop.f32.mrb[0].mxu0
    %v615 = vadd.f32 0.0, %v614
    %v616 = vpop.f32.mrb[0].mxu0
    %617 = vmatprep.mubr.bf16.mxu0 0
    %618 = vmatmul.mubr.bf16.gmra.mrb[0].mxu0 %v575
    %v619 = vpop.f32.mrb[0].mxu0
    %v620 = vadd.f32 0.0, %v619
    %v621 = vpop.f32.mrb[0].mxu0
    %v622 = vpop.f32.mrb[0].mxu0
    %v623 = vadd.f32 0.0, %v622
    %v624 = vpop.f32.mrb[0].mxu0
    %625 = vdwg.mxu0
    %630 = vrot.lane.b32.xlu0 %v612, 32
    %v631 = vpop.permute.xlu0 %630
    %632 = vrot.lane.b32.xlu0 %v615, 32
    %v633 = vpop.permute.xlu0 %632
    %634 = vrot.lane.b32.xlu0 %v620, 32
    %v635 = vpop.permute.xlu0 %634
    %636 = vrot.lane.b32.xlu0 %v623, 32
    %v637 = vpop.permute.xlu0 %636
    %v642 = vsel %vm463, %v505, %v631
    %v643 = vsel %vm463, %v508, %v633
    %v644 = vsel %vm463, %v513, %v635
    %v645 = vsel %vm463, %v516, %v637
    %v646 = vmul.f32 %v642, 0.17677669
    %v647 = vmul.f32 %v643, 0.17677669
    %v648 = vmul.f32 %v644, 0.17677669
    %v649 = vmul.f32 %v645, 0.17677669
    %v650 = vadd.f32 %v646, %v399
    %v651 = vadd.f32 %v647, %v400
    %v652 = vadd.f32 %v648, %v401
    %v653 = vadd.f32 %v649, %v402
    %v654 = vsel %vm128, %v650, -inf
    %655 = vmax.xlane.f32.xlu0 %v654
    %v656 = vpop.xlane.xlu0 %655
    %v657 = vsel %vm128, %v651, -inf
    %658 = vmax.xlane.f32.xlu0 %v657
    %v659 = vpop.xlane.xlu0 %658
    %v660 = vsel %vm128, %v652, -inf
    %661 = vmax.xlane.f32.xlu0 %v660
    %v662 = vpop.xlane.xlu0 %661
    %v663 = vsel %vm128, %v653, -inf
    %664 = vmax.xlane.f32.xlu0 %v663
    %v665 = vpop.xlane.xlu0 %664
    %v666 = vsub.f32 %v650, %v656
    %v667 = vsub.f32 %v651, %v659
    %v668 = vsub.f32 %v652, %v662
    %v669 = vsub.f32 %v653, %v665
    %v670 = vmul.f32 %v666, 1.442695
    %v671 = vpow.pop %v670
    %v672 = vmul.f32 %v667, 1.442695
    %v673 = vpow.pop %v672
    %v674 = vmul.f32 %v668, 1.442695
    %v675 = vpow.pop %v674
    %v676 = vmul.f32 %v669, 1.442695
    %v677 = vpow.pop %v676
    %v679 = vsel %vm128, %v671, 0
    %v682 = vsel %vm128, %v673, 0
    %v685 = vsel %vm128, %v675, 0
    %v688 = vsel %vm128, %v677, 0
    %690 = vmatprep.subr.mxu0 0.0
    %691 = vmatpush1.msra.mxu0 %v403
    %692 = vmatprep.subr.mxu0 0.0
    %693 = vmatpush1.msra.mxu0 %v404
    %694 = vmatprep.subr.mxu0 0.0
    %695 = vmatpush1.msra.mxu0 %v405
    %696 = vmatprep.subr.mxu0 0.0
    %697 = vmatpush1.msra.mxu0 %v406
    %698 = vmatprep.subr.mxu0 0.0
    %699 = vmatpush1.msra.mxu0 %v407
    %700 = vmatprep.subr.mxu0 0.0
    %701 = vmatpush1.msra.mxu0 %v408
    %702 = vmatprep.subr.mxu0 0.0
    %703 = vmatpush1.msra.mxu0 %v409
    %704 = vmatprep.subr.mxu0 0.0
    %705 = vmatpush1.msra.mxu0 %v410
    %706 = vmatprep.subr.mxu0 0.0
    %707 = vmatpush1.msra.mxu0 0.0
    %708 = vmatprep.subr.mxu0 0.0
    %709 = vmatpush1.msra.mxu0 0.0
    %710 = vmatprep.subr.mxu0 0.0
    %711 = vmatpush1.msra.mxu0 0.0
    %712 = vmatprep.subr.mxu0 0.0
    %713 = vmatpush1.msra.mxu0 0.0
    %714 = vmatprep.subr.mxu0 0.0
    %715 = vmatpush1.msra.mxu0 0.0
    %716 = vmatprep.subr.mxu0 0.0
    %717 = vmatpush1.msra.mxu0 0.0
    %718 = vmatprep.subr.mxu0 0.0
    %719 = vmatpush1.msra.mxu0 0.0
    %720 = vmatprep.subr.mxu0 0.0
    %721 = vmatpush1.msra.mxu0 0.0
    %722 = vmatprep.subr.mxu0 0.0
    %723 = vmatpush1.msra.mxu0 0.0
    %724 = vmatprep.subr.mxu0 0.0
    %725 = vmatpush1.msra.mxu0 0.0
    %726 = vmatprep.subr.mxu0 0.0
    %727 = vmatpush1.msra.mxu0 0.0
    %728 = vmatprep.subr.mxu0 0.0
    %729 = vmatpush1.msra.mxu0 0.0
    %730 = vmatprep.subr.mxu0 0.0
    %731 = vmatpush1.msra.mxu0 0.0
    %732 = vmatprep.subr.mxu0 0.0
    %733 = vmatpush1.msra.mxu0 0.0
    %734 = vmatprep.subr.mxu0 0.0
    %735 = vmatpush1.msra.mxu0 0.0
    %736 = vmatprep.subr.mxu0 0.0
    %737 = vmatpush1.msra.mxu0 0.0
    %738 = vmatprep.subr.mxu0 0.0
    %739 = vmatpush1.msra.mxu0 0.0
    %740 = vmatprep.subr.mxu0 0.0
    %741 = vmatpush1.msra.mxu0 0.0
    %742 = vmatprep.subr.mxu0 0.0
    %743 = vmatpush1.msra.mxu0 0.0
    %744 = vmatprep.subr.mxu0 0.0
    %745 = vmatpush1.msra.mxu0 0.0
    %746 = vmatprep.subr.mxu0 0.0
    %747 = vmatpush1.msra.mxu0 0.0
    %748 = vmatprep.subr.mxu0 0.0
    %749 = vmatpush1.msra.mxu0 0.0
    %750 = vmatprep.subr.mxu0 0.0
    %751 = vmatpush1.msra.mxu0 0.0
    %752 = vmatprep.subr.mxu0 0.0
    %753 = vmatpush1.msra.mxu0 0.0
    %754 = vmatprep.mubr.f32.mxu0 0.0
    %755 = vmatmul.mubr.f32.gmra.mrb[0].mxu0 %v679
    %v756 = vpop.f32.mrb[0].mxu0
    %v757 = vadd.f32 0.0, %v756
    %v758 = vpop.f32.mrb[0].mxu0
    %759 = vmatprep.mubr.f32.mxu0 0.0
    %760 = vmatmul.mubr.f32.gmra.mrb[0].mxu0 %v682
    %v761 = vpop.f32.mrb[0].mxu0
    %v762 = vadd.f32 0.0, %v761
    %v763 = vpop.f32.mrb[0].mxu0
    %764 = vmatprep.mubr.f32.mxu0 0.0
    %765 = vmatmul.mubr.f32.gmra.mrb[0].mxu0 %v685
    %v766 = vpop.f32.mrb[0].mxu0
    %v767 = vadd.f32 0.0, %v766
    %v768 = vpop.f32.mrb[0].mxu0
    %769 = vmatprep.mubr.f32.mxu0 0.0
    %770 = vmatmul.mubr.f32.gmra.mrb[0].mxu0 %v688
    %v771 = vpop.f32.mrb[0].mxu0
    %v772 = vadd.f32 0.0, %v771
    %v773 = vpop.f32.mrb[0].mxu0
    %774 = vdwg.mxu0
    %v775 = vrcp.pop %v757
    %v776 = vrcp.pop %v762
    %v777 = vrcp.pop %v767
    %v778 = vrcp.pop %v772
    %v779 = vmul.f32 %v671, %v775
    %v780 = vmul.f32 %v673, %v776
    %v781 = vmul.f32 %v675, %v777
    %v782 = vmul.f32 %v677, %v778
    %787 = vrot.lane.b32.xlu0 %v363, 64
    %v788 = vpop.permute.xlu0 %787
    %789 = vrot.lane.b32.xlu0 %v367, 64
    %v790 = vpop.permute.xlu0 %789
    %791 = vrot.lane.b32.xlu0 %v373, 64
    %v792 = vpop.permute.xlu0 %791
    %793 = vrot.lane.b32.xlu0 %v377, 64
    %v794 = vpop.permute.xlu0 %793
    %v799 = vpack.c.bf16 %v780, %v779
    %v800 = vpack.c.bf16 %v782, %v781
    %v801 = vpack.c.bf16 %v367, %v363
    %v802 = vpack.c.bf16 %v377, %v373
    %v803 = vpack.c.bf16 %v790, %v788
    %v804 = vpack.c.bf16 %v794, %v792
    %v806 = vsel %vm128, %v799, 0
    %v809 = vsel %vm128, %v800, 0
    %811 = vmatprep.subr.bf16.mxu0 0
    %812 = vmatpush1.bf16.msra.mxu0 %v801
    %813 = vmatprep.subr.bf16.mxu0 0
    %814 = vmatpush1.bf16.msra.mxu0 %v802
    %815 = vmatprep.subr.bf16.mxu0 0
    %816 = vmatpush1.bf16.msra.mxu0 %v803
    %817 = vmatprep.subr.bf16.mxu0 0
    %818 = vmatpush1.bf16.msra.mxu0 %v804
    %819 = vmatprep.subr.bf16.mxu0 0
    %820 = vmatpush1.bf16.msra.mxu0 0
    %821 = vmatprep.subr.bf16.mxu0 0
    %822 = vmatpush1.bf16.msra.mxu0 0
    %823 = vmatprep.subr.bf16.mxu0 0
    %824 = vmatpush1.bf16.msra.mxu0 0
    %825 = vmatprep.subr.bf16.mxu0 0
    %826 = vmatpush1.bf16.msra.mxu0 0
    %827 = vmatprep.subr.bf16.mxu0 0
    %828 = vmatpush1.bf16.msra.mxu0 0
    %829 = vmatprep.subr.bf16.mxu0 0
    %830 = vmatpush1.bf16.msra.mxu0 0
    %831 = vmatprep.subr.bf16.mxu0 0
    %832 = vmatpush1.bf16.msra.mxu0 0
    %833 = vmatprep.subr.bf16.mxu0 0
    %834 = vmatpush1.bf16.msra.mxu0 0
    %835 = vmatprep.subr.bf16.mxu0 0
    %836 = vmatpush1.bf16.msra.mxu0 0
    %837 = vmatprep.subr.bf16.mxu0 0
    %838 = vmatpush1.bf16.msra.mxu0 0
    %839 = vmatprep.subr.bf16.mxu0 0
    %840 = vmatpush1.bf16.msra.mxu0 0
    %841 = vmatprep.subr.bf16.mxu0 0
    %842 = vmatpush1.bf16.msra.mxu0 0
    %843 = vmatprep.mubr.bf16.mxu0 0
    %844 = vmatmul.mubr.bf16.gmra.mrb[0].mxu0 %v806
    %v845 = vpop.f32.mrb[0].mxu0
    %v846 = vadd.f32 0.0, %v845
    %v847 = vpop.f32.mrb[0].mxu0
    %v848 = vpop.f32.mrb[0].mxu0
    %v849 = vadd.f32 0.0, %v848
    %v850 = vpop.f32.mrb[0].mxu0
    %851 = vmatprep.mubr.bf16.mxu0 0
    %852 = vmatmul.mubr.bf16.gmra.mrb[0].mxu0 %v809
    %v853 = vpop.f32.mrb[0].mxu0
    %v854 = vadd.f32 0.0, %v853
    %v855 = vpop.f32.mrb[0].mxu0
    %v856 = vpop.f32.mrb[0].mxu0
    %v857 = vadd.f32 0.0, %v856
    %v858 = vpop.f32.mrb[0].mxu0
    %859 = vdwg.mxu0
    %v860 = vpack.c.bf16 %v385, %v381
    %v861 = vpack.c.bf16 %v395, %v391
    %866 = vrot.lane.b32.xlu0 %v381, 64
    %v867 = vpop.permute.xlu0 %866
    %868 = vrot.lane.b32.xlu0 %v385, 64
    %v869 = vpop.permute.xlu0 %868
    %870 = vrot.lane.b32.xlu0 %v391, 64
    %v871 = vpop.permute.xlu0 %870
    %872 = vrot.lane.b32.xlu0 %v395, 64
    %v873 = vpop.permute.xlu0 %872
    %878 = vxpose.xlu0.b32.start [1/16] %v867, 128
    %879 = vxpose.xlu0.b32.cont [2/16] %v869, 128
    %880 = vxpose.xlu0.b32.cont [3/16] %v871, 128
    %881 = vxpose.xlu0.b32.cont [4/16] %v873, 128
    %882 = vxpose.xlu0.b32.cont [5/16] 0.0, 128
    %883 = vxpose.xlu0.b32.cont [6/16] 0.0, 128
    %884 = vxpose.xlu0.b32.cont [7/16] 0.0, 128
    %885 = vxpose.xlu0.b32.cont [8/16] 0.0, 128
    %886 = vxpose.xlu0.b32.cont [9/16] 0.0, 128
    %887 = vxpose.xlu0.b32.cont [10/16] 0.0, 128
    %888 = vxpose.xlu0.b32.cont [11/16] 0.0, 128
    %889 = vxpose.xlu0.b32.cont [12/16] 0.0, 128
    %890 = vxpose.xlu0.b32.cont [13/16] 0.0, 128
    %891 = vxpose.xlu0.b32.cont [14/16] 0.0, 128
    %892 = vxpose.xlu0.b32.cont [15/16] 0.0, 128
    %893 = vxpose.xlu0.b32.end [16/16] 0.0, 128
    %v894 = vpop.trf.xlu0
    %v895 = vpop.trf.xlu0
    %v896 = vpop.trf.xlu0
    %v897 = vpop.trf.xlu0
    %v898 = vpop.trf.xlu0
    %v899 = vpop.trf.xlu0
    %v900 = vpop.trf.xlu0
    %v901 = vpop.trf.xlu0
    %v902 = vpop.trf.xlu0
    %v903 = vpop.trf.xlu0
    %v904 = vpop.trf.xlu0
    %v905 = vpop.trf.xlu0
    %v906 = vpop.trf.xlu0
    %v907 = vpop.trf.xlu0
    %v908 = vpop.trf.xlu0
    %v909 = vpop.trf.xlu0
    %v910 = vpack.c.bf16 %v895, %v894
    %v911 = vpack.c.bf16 %v897, %v896
    %v913 = vsel %vm463, %v860, 0
    %v916 = vsel %vm463, %v861, 0
    %918 = vmatprep.subr.bf16.mxu0 0
    %919 = vmatpush1.bf16.msra.mxu0 %v910
    %920 = vmatprep.subr.bf16.mxu0 0
    %921 = vmatpush1.bf16.msra.mxu0 %v911
    %922 = vmatprep.subr.bf16.mxu0 0
    %923 = vmatpush1.bf16.msra.mxu0 0
    %924 = vmatprep.subr.bf16.mxu0 0
    %925 = vmatpush1.bf16.msra.mxu0 0
    %926 = vmatprep.subr.bf16.mxu0 0
    %927 = vmatpush1.bf16.msra.mxu0 0
    %928 = vmatprep.subr.bf16.mxu0 0
    %929 = vmatpush1.bf16.msra.mxu0 0
    %930 = vmatprep.subr.bf16.mxu0 0
    %931 = vmatpush1.bf16.msra.mxu0 0
    %932 = vmatprep.subr.bf16.mxu0 0
    %933 = vmatpush1.bf16.msra.mxu0 0
    %934 = vmatprep.subr.bf16.mxu0 0
    %935 = vmatpush1.bf16.msra.mxu0 0
    %936 = vmatprep.subr.bf16.mxu0 0
    %937 = vmatpush1.bf16.msra.mxu0 0
    %938 = vmatprep.subr.bf16.mxu0 0
    %939 = vmatpush1.bf16.msra.mxu0 0
    %940 = vmatprep.subr.bf16.mxu0 0
    %941 = vmatpush1.bf16.msra.mxu0 0
    %942 = vmatprep.subr.bf16.mxu0 0
    %943 = vmatpush1.bf16.msra.mxu0 0
    %944 = vmatprep.subr.bf16.mxu0 0
    %945 = vmatpush1.bf16.msra.mxu0 0
    %946 = vmatprep.subr.bf16.mxu0 0
    %947 = vmatpush1.bf16.msra.mxu0 0
    %948 = vmatprep.subr.bf16.mxu0 0
    %949 = vmatpush1.bf16.msra.mxu0 0
    %950 = vmatprep.mubr.bf16.mxu0 0
    %951 = vmatmul.mubr.bf16.gmra.mrb[0].mxu0 %v913
    %v952 = vpop.f32.mrb[0].mxu0
    %v953 = vadd.f32 0.0, %v952
    %v954 = vpop.f32.mrb[0].mxu0
    %v955 = vpop.f32.mrb[0].mxu0
    %v956 = vadd.f32 0.0, %v955
    %v957 = vpop.f32.mrb[0].mxu0
    %958 = vmatprep.mubr.bf16.mxu0 0
    %959 = vmatmul.mubr.bf16.gmra.mrb[0].mxu0 %v916
    %v960 = vpop.f32.mrb[0].mxu0
    %v961 = vadd.f32 0.0, %v960
    %v962 = vpop.f32.mrb[0].mxu0
    %v963 = vpop.f32.mrb[0].mxu0
    %v964 = vadd.f32 0.0, %v963
    %v965 = vpop.f32.mrb[0].mxu0
    %966 = vdwg.mxu0
    %967 = vrot.lane.b32.xlu0 %v381, 32
    %v968 = vpop.permute.xlu0 %967
    %969 = vrot.lane.b32.xlu0 %v385, 32
    %v970 = vpop.permute.xlu0 %969
    %971 = vrot.lane.b32.xlu0 %v391, 32
    %v972 = vpop.permute.xlu0 %971
    %973 = vrot.lane.b32.xlu0 %v395, 32
    %v974 = vpop.permute.xlu0 %973
    %979 = vxpose.xlu0.b32.start [1/16] %v968, 128
    %980 = vxpose.xlu0.b32.cont [2/16] %v970, 128
    %981 = vxpose.xlu0.b32.cont [3/16] %v972, 128
    %982 = vxpose.xlu0.b32.cont [4/16] %v974, 128
    %983 = vxpose.xlu0.b32.cont [5/16] 0.0, 128
    %984 = vxpose.xlu0.b32.cont [6/16] 0.0, 128
    %985 = vxpose.xlu0.b32.cont [7/16] 0.0, 128
    %986 = vxpose.xlu0.b32.cont [8/16] 0.0, 128
    %987 = vxpose.xlu0.b32.cont [9/16] 0.0, 128
    %988 = vxpose.xlu0.b32.cont [10/16] 0.0, 128
    %989 = vxpose.xlu0.b32.cont [11/16] 0.0, 128
    %990 = vxpose.xlu0.b32.cont [12/16] 0.0, 128
    %991 = vxpose.xlu0.b32.cont [13/16] 0.0, 128
    %992 = vxpose.xlu0.b32.cont [14/16] 0.0, 128
    %993 = vxpose.xlu0.b32.cont [15/16] 0.0, 128
    %994 = vxpose.xlu0.b32.end [16/16] 0.0, 128
    %v995 = vpop.trf.xlu0
    %v996 = vpop.trf.xlu0
    %v997 = vpop.trf.xlu0
    %v998 = vpop.trf.xlu0
    %v999 = vpop.trf.xlu0
    %v1000 = vpop.trf.xlu0
    %v1001 = vpop.trf.xlu0
    %v1002 = vpop.trf.xlu0
    %v1003 = vpop.trf.xlu0
    %v1004 = vpop.trf.xlu0
    %v1005 = vpop.trf.xlu0
    %v1006 = vpop.trf.xlu0
    %v1007 = vpop.trf.xlu0
    %v1008 = vpop.trf.xlu0
    %v1009 = vpop.trf.xlu0
    %v1010 = vpop.trf.xlu0
    %v1011 = vpack.c.bf16 %v996, %v995
    %v1012 = vpack.c.bf16 %v998, %v997
    %1015 = vrot.lane.b32.xlu0 %v860, 96
    %v1016 = vpop.permute.xlu0 %1015
    %1017 = vrot.lane.b32.xlu0 %v861, 96
    %v1018 = vpop.permute.xlu0 %1017
    %v1020 = vsel %vm463, %v1016, 0
    %v1023 = vsel %vm463, %v1018, 0
    %1025 = vmatprep.subr.bf16.mxu0 0
    %1026 = vmatpush1.bf16.msra.mxu0 %v1011
    %1027 = vmatprep.subr.bf16.mxu0 0
    %1028 = vmatpush1.bf16.msra.mxu0 %v1012
    %1029 = vmatprep.subr.bf16.mxu0 0
    %1030 = vmatpush1.bf16.msra.mxu0 0
    %1031 = vmatprep.subr.bf16.mxu0 0
    %1032 = vmatpush1.bf16.msra.mxu0 0
    %1033 = vmatprep.subr.bf16.mxu0 0
    %1034 = vmatpush1.bf16.msra.mxu0 0
    %1035 = vmatprep.subr.bf16.mxu0 0
    %1036 = vmatpush1.bf16.msra.mxu0 0
    %1037 = vmatprep.subr.bf16.mxu0 0
    %1038 = vmatpush1.bf16.msra.mxu0 0
    %1039 = vmatprep.subr.bf16.mxu0 0
    %1040 = vmatpush1.bf16.msra.mxu0 0
    %1041 = vmatprep.subr.bf16.mxu0 0
    %1042 = vmatpush1.bf16.msra.mxu0 0
    %1043 = vmatprep.subr.bf16.mxu0 0
    %1044 = vmatpush1.bf16.msra.mxu0 0
    %1045 = vmatprep.subr.bf16.mxu0 0
    %1046 = vmatpush1.bf16.msra.mxu0 0
    %1047 = vmatprep.subr.bf16.mxu0 0
    %1048 = vmatpush1.bf16.msra.mxu0 0
    %1049 = vmatprep.subr.bf16.mxu0 0
    %1050 = vmatpush1.bf16.msra.mxu0 0
    %1051 = vmatprep.subr.bf16.mxu0 0
    %1052 = vmatpush1.bf16.msra.mxu0 0
    %1053 = vmatprep.subr.bf16.mxu0 0
    %1054 = vmatpush1.bf16.msra.mxu0 0
    %1055 = vmatprep.subr.bf16.mxu0 0
    %1056 = vmatpush1.bf16.msra.mxu0 0
    %1057 = vmatprep.mubr.bf16.mxu0 0
    %1058 = vmatmul.mubr.bf16.gmra.mrb[0].mxu0 %v1020
    %v1059 = vpop.f32.mrb[0].mxu0
    %v1060 = vadd.f32 0.0, %v1059
    %v1061 = vpop.f32.mrb[0].mxu0
    %v1062 = vpop.f32.mrb[0].mxu0
    %v1063 = vadd.f32 0.0, %v1062
    %v1064 = vpop.f32.mrb[0].mxu0
    %1065 = vmatprep.mubr.bf16.mxu0 0
    %1066 = vmatmul.mubr.bf16.gmra.mrb[0].mxu0 %v1023
    %v1067 = vpop.f32.mrb[0].mxu0
    %v1068 = vadd.f32 0.0, %v1067
    %v1069 = vpop.f32.mrb[0].mxu0
    %v1070 = vpop.f32.mrb[0].mxu0
    %v1071 = vadd.f32 0.0, %v1070
    %v1072 = vpop.f32.mrb[0].mxu0
    %1073 = vdwg.mxu0
    %1078 = vrot.lane.b32.xlu0 %v1060, 32
    %v1079 = vpop.permute.xlu0 %1078
    %1080 = vrot.lane.b32.xlu0 %v1063, 32
    %v1081 = vpop.permute.xlu0 %1080
    %1082 = vrot.lane.b32.xlu0 %v1068, 32
    %v1083 = vpop.permute.xlu0 %1082
    %1084 = vrot.lane.b32.xlu0 %v1071, 32
    %v1085 = vpop.permute.xlu0 %1084
    %v1090 = vsel %vm463, %v953, %v1079
    %v1091 = vsel %vm463, %v956, %v1081
    %v1092 = vsel %vm463, %v961, %v1083
    %v1093 = vsel %vm463, %v964, %v1085
    %v1094 = vmul.f32 %v1090, 0.17677669
    %v1095 = vmul.f32 %v1091, 0.17677669
    %v1096 = vmul.f32 %v1092, 0.17677669
    %v1097 = vmul.f32 %v1093, 0.17677669
    %v1098 = vadd.f32 %v1094, %v399
    %v1099 = vadd.f32 %v1095, %v400
    %v1100 = vadd.f32 %v1096, %v401
    %v1101 = vadd.f32 %v1097, %v402
    %v1102 = vsel %vm128, %v1098, -inf
    %1103 = vmax.xlane.f32.xlu0 %v1102
    %v1104 = vpop.xlane.xlu0 %1103
    %v1105 = vsel %vm128, %v1099, -inf
    %1106 = vmax.xlane.f32.xlu0 %v1105
    %v1107 = vpop.xlane.xlu0 %1106
    %v1108 = vsel %vm128, %v1100, -inf
    %1109 = vmax.xlane.f32.xlu0 %v1108
    %v1110 = vpop.xlane.xlu0 %1109
    %v1111 = vsel %vm128, %v1101, -inf
    %1112 = vmax.xlane.f32.xlu0 %v1111
    %v1113 = vpop.xlane.xlu0 %1112
    %v1114 = vsub.f32 %v1098, %v1104
    %v1115 = vsub.f32 %v1099, %v1107
    %v1116 = vsub.f32 %v1100, %v1110
    %v1117 = vsub.f32 %v1101, %v1113
    %v1118 = vmul.f32 %v1114, 1.442695
    %v1119 = vpow.pop %v1118
    %v1120 = vmul.f32 %v1115, 1.442695
    %v1121 = vpow.pop %v1120
    %v1122 = vmul.f32 %v1116, 1.442695
    %v1123 = vpow.pop %v1122
    %v1124 = vmul.f32 %v1117, 1.442695
    %v1125 = vpow.pop %v1124
    %v1127 = vsel %vm128, %v1119, 0
    %v1130 = vsel %vm128, %v1121, 0
    %v1133 = vsel %vm128, %v1123, 0
    %v1136 = vsel %vm128, %v1125, 0
    %1138 = vmatprep.subr.mxu0 0.0
    %1139 = vmatpush1.msra.mxu0 %v403
    %1140 = vmatprep.subr.mxu0 0.0
    %1141 = vmatpush1.msra.mxu0 %v404
    %1142 = vmatprep.subr.mxu0 0.0
    %1143 = vmatpush1.msra.mxu0 %v405
    %1144 = vmatprep.subr.mxu0 0.0
    %1145 = vmatpush1.msra.mxu0 %v406
    %1146 = vmatprep.subr.mxu0 0.0
    %1147 = vmatpush1.msra.mxu0 %v407
    %1148 = vmatprep.subr.mxu0 0.0
    %1149 = vmatpush1.msra.mxu0 %v408
    %1150 = vmatprep.subr.mxu0 0.0
    %1151 = vmatpush1.msra.mxu0 %v409
    %1152 = vmatprep.subr.mxu0 0.0
    %1153 = vmatpush1.msra.mxu0 %v410
    %1154 = vmatprep.subr.mxu0 0.0
    %1155 = vmatpush1.msra.mxu0 0.0
    %1156 = vmatprep.subr.mxu0 0.0
    %1157 = vmatpush1.msra.mxu0 0.0
    %1158 = vmatprep.subr.mxu0 0.0
    %1159 = vmatpush1.msra.mxu0 0.0
    %1160 = vmatprep.subr.mxu0 0.0
    %1161 = vmatpush1.msra.mxu0 0.0
    %1162 = vmatprep.subr.mxu0 0.0
    %1163 = vmatpush1.msra.mxu0 0.0
    %1164 = vmatprep.subr.mxu0 0.0
    %1165 = vmatpush1.msra.mxu0 0.0
    %1166 = vmatprep.subr.mxu0 0.0
    %1167 = vmatpush1.msra.mxu0 0.0
    %1168 = vmatprep.subr.mxu0 0.0
    %1169 = vmatpush1.msra.mxu0 0.0
    %1170 = vmatprep.subr.mxu0 0.0
    %1171 = vmatpush1.msra.mxu0 0.0
    %1172 = vmatprep.subr.mxu0 0.0
    %1173 = vmatpush1.msra.mxu0 0.0
    %1174 = vmatprep.subr.mxu0 0.0
    %1175 = vmatpush1.msra.mxu0 0.0
    %1176 = vmatprep.subr.mxu0 0.0
    %1177 = vmatpush1.msra.mxu0 0.0
    %1178 = vmatprep.subr.mxu0 0.0
    %1179 = vmatpush1.msra.mxu0 0.0
    %1180 = vmatprep.subr.mxu0 0.0
    %1181 = vmatpush1.msra.mxu0 0.0
    %1182 = vmatprep.subr.mxu0 0.0
    %1183 = vmatpush1.msra.mxu0 0.0
    %1184 = vmatprep.subr.mxu0 0.0
    %1185 = vmatpush1.msra.mxu0 0.0
    %1186 = vmatprep.subr.mxu0 0.0
    %1187 = vmatpush1.msra.mxu0 0.0
    %1188 = vmatprep.subr.mxu0 0.0
    %1189 = vmatpush1.msra.mxu0 0.0
    %1190 = vmatprep.subr.mxu0 0.0
    %1191 = vmatpush1.msra.mxu0 0.0
    %1192 = vmatprep.subr.mxu0 0.0
    %1193 = vmatpush1.msra.mxu0 0.0
    %1194 = vmatprep.subr.mxu0 0.0
    %1195 = vmatpush1.msra.mxu0 0.0
    %1196 = vmatprep.subr.mxu0 0.0
    %1197 = vmatpush1.msra.mxu0 0.0
    %1198 = vmatprep.subr.mxu0 0.0
    %1199 = vmatpush1.msra.mxu0 0.0
    %1200 = vmatprep.subr.mxu0 0.0
    %1201 = vmatpush1.msra.mxu0 0.0
    %1202 = vmatprep.mubr.f32.mxu0 0.0
    %1203 = vmatmul.mubr.f32.gmra.mrb[0].mxu0 %v1127
    %v1204 = vpop.f32.mrb[0].mxu0
    %v1205 = vadd.f32 0.0, %v1204
    %v1206 = vpop.f32.mrb[0].mxu0
    %1207 = vmatprep.mubr.f32.mxu0 0.0
    %1208 = vmatmul.mubr.f32.gmra.mrb[0].mxu0 %v1130
    %v1209 = vpop.f32.mrb[0].mxu0
    %v1210 = vadd.f32 0.0, %v1209
    %v1211 = vpop.f32.mrb[0].mxu0
    %1212 = vmatprep.mubr.f32.mxu0 0.0
    %1213 = vmatmul.mubr.f32.gmra.mrb[0].mxu0 %v1133
    %v1214 = vpop.f32.mrb[0].mxu0
    %v1215 = vadd.f32 0.0, %v1214
    %v1216 = vpop.f32.mrb[0].mxu0
    %1217 = vmatprep.mubr.f32.mxu0 0.0
    %1218 = vmatmul.mubr.f32.gmra.mrb[0].mxu0 %v1136
    %v1219 = vpop.f32.mrb[0].mxu0
    %v1220 = vadd.f32 0.0, %v1219
    %v1221 = vpop.f32.mrb[0].mxu0
    %1222 = vdwg.mxu0
    %v1223 = vrcp.pop %v1205
    %v1224 = vrcp.pop %v1210
    %v1225 = vrcp.pop %v1215
    %v1226 = vrcp.pop %v1220
    %v1227 = vmul.f32 %v1119, %v1223
    %v1228 = vmul.f32 %v1121, %v1224
    %v1229 = vmul.f32 %v1123, %v1225
    %v1230 = vmul.f32 %v1125, %v1226
    %1235 = vrot.lane.b32.xlu0 %v383, 64
    %v1236 = vpop.permute.xlu0 %1235
    %1237 = vrot.lane.b32.xlu0 %v387, 64
    %v1238 = vpop.permute.xlu0 %1237
    %1239 = vrot.lane.b32.xlu0 %v393, 64
    %v1240 = vpop.permute.xlu0 %1239
    %1241 = vrot.lane.b32.xlu0 %v397, 64
    %v1242 = vpop.permute.xlu0 %1241
    %v1247 = vpack.c.bf16 %v1228, %v1227
    %v1248 = vpack.c.bf16 %v1230, %v1229
    %v1249 = vpack.c.bf16 %v387, %v383
    %v1250 = vpack.c.bf16 %v397, %v393
    %v1251 = vpack.c.bf16 %v1238, %v1236
    %v1252 = vpack.c.bf16 %v1242, %v1240
    %v1254 = vsel %vm128, %v1247, 0
    %v1257 = vsel %vm128, %v1248, 0
    %1259 = vmatprep.subr.bf16.mxu0 0
    %1260 = vmatpush1.bf16.msra.mxu0 %v1249
    %1261 = vmatprep.subr.bf16.mxu0 0
    %1262 = vmatpush1.bf16.msra.mxu0 %v1250
    %1263 = vmatprep.subr.bf16.mxu0 0
    %1264 = vmatpush1.bf16.msra.mxu0 %v1251
    %1265 = vmatprep.subr.bf16.mxu0 0
    %1266 = vmatpush1.bf16.msra.mxu0 %v1252
    %1267 = vmatprep.subr.bf16.mxu0 0
    %1268 = vmatpush1.bf16.msra.mxu0 0
    %1269 = vmatprep.subr.bf16.mxu0 0
    %1270 = vmatpush1.bf16.msra.mxu0 0
    %1271 = vmatprep.subr.bf16.mxu0 0
    %1272 = vmatpush1.bf16.msra.mxu0 0
    %1273 = vmatprep.subr.bf16.mxu0 0
    %1274 = vmatpush1.bf16.msra.mxu0 0
    %1275 = vmatprep.subr.bf16.mxu0 0
    %1276 = vmatpush1.bf16.msra.mxu0 0
    %1277 = vmatprep.subr.bf16.mxu0 0
    %1278 = vmatpush1.bf16.msra.mxu0 0
    %1279 = vmatprep.subr.bf16.mxu0 0
    %1280 = vmatpush1.bf16.msra.mxu0 0
    %1281 = vmatprep.subr.bf16.mxu0 0
    %1282 = vmatpush1.bf16.msra.mxu0 0
    %1283 = vmatprep.subr.bf16.mxu0 0
    %1284 = vmatpush1.bf16.msra.mxu0 0
    %1285 = vmatprep.subr.bf16.mxu0 0
    %1286 = vmatpush1.bf16.msra.mxu0 0
    %1287 = vmatprep.subr.bf16.mxu0 0
    %1288 = vmatpush1.bf16.msra.mxu0 0
    %1289 = vmatprep.subr.bf16.mxu0 0
    %1290 = vmatpush1.bf16.msra.mxu0 0
    %1291 = vmatprep.mubr.bf16.mxu0 0
    %1292 = vmatmul.mubr.bf16.gmra.mrb[0].mxu0 %v1254
    %v1293 = vpop.f32.mrb[0].mxu0
    %v1294 = vadd.f32 0.0, %v1293
    %v1295 = vpop.f32.mrb[0].mxu0
    %v1296 = vpop.f32.mrb[0].mxu0
    %v1297 = vadd.f32 0.0, %v1296
    %v1298 = vpop.f32.mrb[0].mxu0
    %1299 = vmatprep.mubr.bf16.mxu0 0
    %1300 = vmatmul.mubr.bf16.gmra.mrb[0].mxu0 %v1257
    %v1301 = vpop.f32.mrb[0].mxu0
    %v1302 = vadd.f32 0.0, %v1301
    %v1303 = vpop.f32.mrb[0].mxu0
    %v1304 = vpop.f32.mrb[0].mxu0
    %v1305 = vadd.f32 0.0, %v1304
    %v1306 = vpop.f32.mrb[0].mxu0
    %1307 = vdwg.mxu0
    %v1308 = vadd.f32 %v118, %v846
    %v1309 = vadd.f32 %v119, %v849
    %v1310 = vadd.f32 %v120, %v854
    %v1311 = vadd.f32 %v121, %v857
    %v1312 = vadd.f32 %v122, %v1294
    %v1313 = vadd.f32 %v123, %v1297
    %v1314 = vadd.f32 %v124, %v1302
    %v1315 = vadd.f32 %v125, %v1305
    %v1316 = vld [vmem:[#allocation7] sm:$0x1]
    %v1318 = vlaneseq
    %v1319 = vshrl.u32 %v1318, 7
    %v1320 = vsub.s32 0, %v1319
    %v1321 = vrot.slane %v1316, %v1320
    %v1323 = vadd.f32 %v1308, %v1321
    %v1324 = vadd.f32 %v1309, %v1321
    %v1325 = vadd.f32 %v1310, %v1321
    %v1326 = vadd.f32 %v1311, %v1321
    %v1327 = vadd.f32 %v1312, %v1321
    %v1328 = vadd.f32 %v1313, %v1321
    %v1329 = vadd.f32 %v1314, %v1321
    %v1330 = vadd.f32 %v1315, %v1321
    %v1331 = vld [vmem:[#allocation8] sm:$0x1]
    %v1332 = vld [vmem:[#allocation10] sm:$0x1]
    %v1333 = vsel %vm128, %v1323, 0.0
    %1334 = vadd.xlane.f32.xlu0 %v1333
    %v1335 = vpop.xlane.xlu0 %1334
    %v1336 = vsel %vm128, %v1324, 0.0
    %1337 = vadd.xlane.f32.xlu0 %v1336
    %v1338 = vpop.xlane.xlu0 %1337
    %v1339 = vsel %vm128, %v1325, 0.0
    %1340 = vadd.xlane.f32.xlu0 %v1339
    %v1341 = vpop.xlane.xlu0 %1340
    %v1342 = vsel %vm128, %v1326, 0.0
    %1343 = vadd.xlane.f32.xlu0 %v1342
    %v1344 = vpop.xlane.xlu0 %1343
    %v1345 = vsel %vm128, %v1327, 0.0
    %1346 = vadd.xlane.f32.xlu0 %v1345
    %v1347 = vpop.xlane.xlu0 %1346
    %v1348 = vsel %vm128, %v1328, 0.0
    %1349 = vadd.xlane.f32.xlu0 %v1348
    %v1350 = vpop.xlane.xlu0 %1349
    %v1351 = vsel %vm128, %v1329, 0.0
    %1352 = vadd.xlane.f32.xlu0 %v1351
    %v1353 = vpop.xlane.xlu0 %1352
    %v1354 = vsel %vm128, %v1330, 0.0
    %1355 = vadd.xlane.f32.xlu0 %v1354
    %v1356 = vpop.xlane.xlu0 %1355
    %v1357 = vmul.f32 %v1335, %v153
    %v1358 = vmul.f32 %v1338, %v153
    %v1359 = vmul.f32 %v1341, %v153
    %v1360 = vmul.f32 %v1344, %v153
    %v1361 = vmul.f32 %v1347, %v153
    %v1362 = vmul.f32 %v1350, %v153
    %v1363 = vmul.f32 %v1353, %v153
    %v1364 = vmul.f32 %v1356, %v153
    %v1365 = vsub.f32 %v1323, %v1357
    %v1366 = vsub.f32 %v1324, %v1358
    %v1367 = vsub.f32 %v1325, %v1359
    %v1368 = vsub.f32 %v1326, %v1360
    %v1369 = vsub.f32 %v1327, %v1361
    %v1370 = vsub.f32 %v1328, %v1362
    %v1371 = vsub.f32 %v1329, %v1363
    %v1372 = vsub.f32 %v1330, %v1364
    %v1373 = vmul.f32 %v1365, %v1365
    %v1374 = vmul.f32 %v1366, %v1366
    %v1375 = vmul.f32 %v1367, %v1367
    %v1376 = vmul.f32 %v1368, %v1368
    %v1377 = vmul.f32 %v1369, %v1369
    %v1378 = vmul.f32 %v1370, %v1370
    %v1379 = vmul.f32 %v1371, %v1371
    %v1380 = vmul.f32 %v1372, %v1372
    %v1381 = vsel %vm128, %v1373, 0.0
    %1382 = vadd.xlane.f32.xlu0 %v1381
    %v1383 = vpop.xlane.xlu0 %1382
    %v1384 = vsel %vm128, %v1374, 0.0
    %1385 = vadd.xlane.f32.xlu0 %v1384
    %v1386 = vpop.xlane.xlu0 %1385
    %v1387 = vsel %vm128, %v1375, 0.0
    %1388 = vadd.xlane.f32.xlu0 %v1387
    %v1389 = vpop.xlane.xlu0 %1388
    %v1390 = vsel %vm128, %v1376, 0.0
    %1391 = vadd.xlane.f32.xlu0 %v1390
    %v1392 = vpop.xlane.xlu0 %1391
    %v1393 = vsel %vm128, %v1377, 0.0
    %1394 = vadd.xlane.f32.xlu0 %v1393
    %v1395 = vpop.xlane.xlu0 %1394
    %v1396 = vsel %vm128, %v1378, 0.0
    %1397 = vadd.xlane.f32.xlu0 %v1396
    %v1398 = vpop.xlane.xlu0 %1397
    %v1399 = vsel %vm128, %v1379, 0.0
    %1400 = vadd.xlane.f32.xlu0 %v1399
    %v1401 = vpop.xlane.xlu0 %1400
    %v1402 = vsel %vm128, %v1380, 0.0
    %1403 = vadd.xlane.f32.xlu0 %v1402
    %v1404 = vpop.xlane.xlu0 %1403
    %v1405 = vmul.f32 %v1383, %v153
    %v1406 = vmul.f32 %v1386, %v153
    %v1407 = vmul.f32 %v1389, %v153
    %v1408 = vmul.f32 %v1392, %v153
    %v1409 = vmul.f32 %v1395, %v153
    %v1410 = vmul.f32 %v1398, %v153
    %v1411 = vmul.f32 %v1401, %v153
    %v1412 = vmul.f32 %v1404, %v153
    %v1413 = vadd.f32 %v1405, 1e-05
    %v1414 = vadd.f32 %v1406, 1e-05
    %v1415 = vadd.f32 %v1407, 1e-05
    %v1416 = vadd.f32 %v1408, 1e-05
    %v1417 = vadd.f32 %v1409, 1e-05
    %v1418 = vadd.f32 %v1410, 1e-05
    %v1419 = vadd.f32 %v1411, 1e-05
    %v1420 = vadd.f32 %v1412, 1e-05
    %v1421 = vrsqrt.pop %v1413
    %v1422 = vrsqrt.pop %v1414
    %v1423 = vrsqrt.pop %v1415
    %v1424 = vrsqrt.pop %v1416
    %v1425 = vrsqrt.pop %v1417
    %v1426 = vrsqrt.pop %v1418
    %v1427 = vrsqrt.pop %v1419
    %v1428 = vrsqrt.pop %v1420
    %v1429 = vmul.f32 %v1365, %v1421
    %v1430 = vmul.f32 %v1366, %v1422
    %v1431 = vmul.f32 %v1367, %v1423
    %v1432 = vmul.f32 %v1368, %v1424
    %v1433 = vmul.f32 %v1369, %v1425
    %v1434 = vmul.f32 %v1370, %v1426
    %v1435 = vmul.f32 %v1371, %v1427
    %v1436 = vmul.f32 %v1372, %v1428
    %v1438 = vlaneseq
    %v1439 = vshrl.u32 %v1438, 7
    %v1440 = vsub.s32 0, %v1439
    %v1441 = vrot.slane %v1331, %v1440
    %v1443 = vmul.f32 %v1429, %v1441
    %v1444 = vmul.f32 %v1430, %v1441
    %v1445 = vmul.f32 %v1431, %v1441
    %v1446 = vmul.f32 %v1432, %v1441
    %v1447 = vmul.f32 %v1433, %v1441
    %v1448 = vmul.f32 %v1434, %v1441
    %v1449 = vmul.f32 %v1435, %v1441
    %v1450 = vmul.f32 %v1436, %v1441
    %v1452 = vlaneseq
    %v1453 = vshrl.u32 %v1452, 7
    %v1454 = vsub.s32 0, %v1453
    %v1455 = vrot.slane %v1332, %v1454
    %v1457 = vadd.f32 %v1443, %v1455
    %v1458 = vadd.f32 %v1444, %v1455
    %v1459 = vadd.f32 %v1445, %v1455
    %v1460 = vadd.f32 %v1446, %v1455
    %v1461 = vadd.f32 %v1447, %v1455
    %v1462 = vadd.f32 %v1448, %v1455
    %v1463 = vadd.f32 %v1449, %v1455
    %v1464 = vadd.f32 %v1450, %v1455
    %v1465 = vpack.c.bf16 %v1458, %v1457
    %v1466 = vpack.c.bf16 %v1460, %v1459
    %v1467 = vpack.c.bf16 %v1462, %v1461
    %v1468 = vpack.c.bf16 %v1464, %v1463
    %v1469 = vld [vmem:[%s7] sm:$0xff]
    %v1470 = vld [vmem:[%s7 + $0x8] sm:$0xff]
    %v1471 = vld [vmem:[%s7 + $0x10] sm:$0xff]
    %v1472 = vld [vmem:[%s7 + $0x18] sm:$0xff]
    %v1473 = vld [vmem:[%s7 + $0x20] sm:$0xff]
    %v1474 = vld [vmem:[%s7 + $0x28] sm:$0xff]
    %v1475 = vld [vmem:[%s7 + $0x30] sm:$0xff]
    %v1476 = vld [vmem:[%s7 + $0x38] sm:$0xff]
    %v1477 = vld [vmem:[%s8] sm:$0x3]
    %v1479 = vlaneseq
    %v1480 = vshrl.u32 %v1479, 7
    %v1481 = vsub.s32 0, %v1480
    %v1482 = vrot.slane %v1477, %v1481
    %v1483 = vlaneseq
    %v1484 = vshrl.u32 %v1483, 7
    %v1485 = vsub.s32 1, %v1484
    %v1486 = vrot.slane %v1477, %v1485
    %v1497 = vunpack.c.l.b16 %v1469
    %v1498 = vunpack.c.h.b16 %v1469
    %v1499 = vunpack.c.l.b16 %v1470
    %v1500 = vunpack.c.h.b16 %v1470
    %v1501 = vunpack.c.l.b16 %v1471
    %v1502 = vunpack.c.h.b16 %v1471
    %v1503 = vunpack.c.l.b16 %v1472
    %v1504 = vunpack.c.h.b16 %v1472
    %v1505 = vunpack.c.l.b16 %v1473
    %v1506 = vunpack.c.h.b16 %v1473
    %v1507 = vunpack.c.l.b16 %v1474
    %v1508 = vunpack.c.h.b16 %v1474
    %v1509 = vunpack.c.l.b16 %v1475
    %v1510 = vunpack.c.h.b16 %v1475
    %v1511 = vunpack.c.l.b16 %v1476
    %v1512 = vunpack.c.h.b16 %v1476
    %v1513 = vpack.c.b16 %v1499, %v1497
    %v1514 = vpack.c.b16 %v1500, %v1498
    %v1515 = vpack.c.b16 %v1503, %v1501
    %v1516 = vpack.c.b16 %v1504, %v1502
    %v1517 = vpack.c.b16 %v1507, %v1505
    %v1518 = vpack.c.b16 %v1508, %v1506
    %v1519 = vpack.c.b16 %v1511, %v1509
    %v1520 = vpack.c.b16 %v1512, %v1510
    %v1530 = vsel %vm128, %v1465, 0
    %v1533 = vsel %vm128, %v1466, 0
    %v1536 = vsel %vm128, %v1467, 0
    %v1539 = vsel %vm128, %v1468, 0
    %1541 = vmatprep.subr.bf16.mxu0 %v1514
    %1542 = vmatpush1.bf16.msra.mxu0 %v1513
    %1543 = vmatprep.subr.bf16.mxu0 %v1516
    %1544 = vmatpush1.bf16.msra.mxu0 %v1515
    %1545 = vmatprep.subr.bf16.mxu0 %v1518
    %1546 = vmatpush1.bf16.msra.mxu0 %v1517
    %1547 = vmatprep.subr.bf16.mxu0 %v1520
    %1548 = vmatpush1.bf16.msra.mxu0 %v1519
    %1549 = vmatprep.subr.bf16.mxu0 0
    %1550 = vmatpush1.bf16.msra.mxu0 0
    %1551 = vmatprep.subr.bf16.mxu0 0
    %1552 = vmatpush1.bf16.msra.mxu0 0
    %1553 = vmatprep.subr.bf16.mxu0 0
    %1554 = vmatpush1.bf16.msra.mxu0 0
    %1555 = vmatprep.subr.bf16.mxu0 0
    %1556 = vmatpush1.bf16.msra.mxu0 0
    %1557 = vmatprep.subr.bf16.mxu0 0
    %1558 = vmatpush1.bf16.msra.mxu0 0
    %1559 = vmatprep.subr.bf16.mxu0 0
    %1560 = vmatpush1.bf16.msra.mxu0 0
    %1561 = vmatprep.subr.bf16.mxu0 0
    %1562 = vmatpush1.bf16.msra.mxu0 0
    %1563 = vmatprep.subr.bf16.mxu0 0
    %1564 = vmatpush1.bf16.msra.mxu0 0
    %1565 = vmatprep.subr.bf16.mxu0 0
    %1566 = vmatpush1.bf16.msra.mxu0 0
    %1567 = vmatprep.subr.bf16.mxu0 0
    %1568 = vmatpush1.bf16.msra.mxu0 0
    %1569 = vmatprep.subr.bf16.mxu0 0
    %1570 = vmatpush1.bf16.msra.mxu0 0
    %1571 = vmatprep.subr.bf16.mxu0 0
    %1572 = vmatpush1.bf16.msra.mxu0 0
    %1573 = vmatprep.mubr.bf16.mxu0 0
    %1574 = vmatmul.mubr.bf16.gmra.mrb[0].mxu0 %v1530
    %v1575 = vpop.f32.mrb[0].mxu0
    %v1576 = vadd.f32 %v1482, %v1575
    %v1577 = vpop.f32.mrb[0].mxu0
    %v1578 = vadd.f32 %v1486, %v1577
    %v1579 = vpop.f32.mrb[0].mxu0
    %v1580 = vadd.f32 %v1482, %v1579
    %v1581 = vpop.f32.mrb[0].mxu0
    %v1582 = vadd.f32 %v1486, %v1581
    %1583 = vmatprep.mubr.bf16.mxu0 0
    %1584 = vmatmul.mubr.bf16.gmra.mrb[0].mxu0 %v1533
    %v1585 = vpop.f32.mrb[0].mxu0
    %v1586 = vadd.f32 %v1482, %v1585
    %v1587 = vpop.f32.mrb[0].mxu0
    %v1588 = vadd.f32 %v1486, %v1587
    %v1589 = vpop.f32.mrb[0].mxu0
    %v1590 = vadd.f32 %v1482, %v1589
    %v1591 = vpop.f32.mrb[0].mxu0
    %v1592 = vadd.f32 %v1486, %v1591
    %1593 = vmatprep.mubr.bf16.mxu0 0
    %1594 = vmatmul.mubr.bf16.gmra.mrb[0].mxu0 %v1536
    %v1595 = vpop.f32.mrb[0].mxu0
    %v1596 = vadd.f32 %v1482, %v1595
    %v1597 = vpop.f32.mrb[0].mxu0
    %v1598 = vadd.f32 %v1486, %v1597
    %v1599 = vpop.f32.mrb[0].mxu0
    %v1600 = vadd.f32 %v1482, %v1599
    %v1601 = vpop.f32.mrb[0].mxu0
    %v1602 = vadd.f32 %v1486, %v1601
    %1603 = vmatprep.mubr.bf16.mxu0 0
    %1604 = vmatmul.mubr.bf16.gmra.mrb[0].mxu0 %v1539
    %v1605 = vpop.f32.mrb[0].mxu0
    %v1606 = vadd.f32 %v1482, %v1605
    %v1607 = vpop.f32.mrb[0].mxu0
    %v1608 = vadd.f32 %v1486, %v1607
    %v1609 = vpop.f32.mrb[0].mxu0
    %v1610 = vadd.f32 %v1482, %v1609
    %v1611 = vpop.f32.mrb[0].mxu0
    %v1612 = vadd.f32 %v1486, %v1611
    %1613 = vdwg.mxu0
    %v1614 = vmax.f32 %v1576, 0.0
    %v1615 = vmax.f32 %v1578, 0.0
    %v1616 = vmax.f32 %v1580, 0.0
    %v1617 = vmax.f32 %v1582, 0.0
    %v1618 = vmax.f32 %v1586, 0.0
    %v1619 = vmax.f32 %v1588, 0.0
    %v1620 = vmax.f32 %v1590, 0.0
    %v1621 = vmax.f32 %v1592, 0.0
    %v1622 = vmax.f32 %v1596, 0.0
    %v1623 = vmax.f32 %v1598, 0.0
    %v1624 = vmax.f32 %v1600, 0.0
    %v1625 = vmax.f32 %v1602, 0.0
    %v1626 = vmax.f32 %v1606, 0.0
    %v1627 = vmax.f32 %v1608, 0.0
    %v1628 = vmax.f32 %v1610, 0.0
    %v1629 = vmax.f32 %v1612, 0.0
    %v1630 = vpack.c.bf16 %v1616, %v1614
    %v1631 = vpack.c.bf16 %v1617, %v1615
    %v1632 = vpack.c.bf16 %v1620, %v1618
    %v1633 = vpack.c.bf16 %v1621, %v1619
    %v1634 = vpack.c.bf16 %v1624, %v1622
    %v1635 = vpack.c.bf16 %v1625, %v1623
    %v1636 = vpack.c.bf16 %v1628, %v1626
    %v1637 = vpack.c.bf16 %v1629, %v1627
    %v1638 = vld [vmem:[%s9] sm:$0xf]
    %v1639 = vld [vmem:[%s9 + $0x4] sm:$0xf]
    %v1640 = vld [vmem:[%s9 + $0x8] sm:$0xf]
    %v1641 = vld [vmem:[%s9 + $0xc] sm:$0xf]
    %v1642 = vld [vmem:[%s9 + $0x10] sm:$0xf]
    %v1643 = vld [vmem:[%s9 + $0x14] sm:$0xf]
    %v1644 = vld [vmem:[%s9 + $0x18] sm:$0xf]
    %v1645 = vld [vmem:[%s9 + $0x1c] sm:$0xf]
    %v1646 = vld [vmem:[%s9 + $0x20] sm:$0xf]
    %v1647 = vld [vmem:[%s9 + $0x24] sm:$0xf]
    %v1648 = vld [vmem:[%s9 + $0x28] sm:$0xf]
    %v1649 = vld [vmem:[%s9 + $0x2c] sm:$0xf]
    %v1650 = vld [vmem:[%s9 + $0x30] sm:$0xf]
    %v1651 = vld [vmem:[%s9 + $0x34] sm:$0xf]
    %v1652 = vld [vmem:[%s9 + $0x38] sm:$0xf]
    %v1653 = vld [vmem:[%s9 + $0x3c] sm:$0xf]
    %v1654 = vld [vmem:[%s9 + $0x40] sm:$0xf]
    %v1655 = vld [vmem:[%s9 + $0x44] sm:$0xf]
    %v1656 = vld [vmem:[%s9 + $0x48] sm:$0xf]
    %v1657 = vld [vmem:[%s9 + $0x4c] sm:$0xf]
    %v1658 = vld [vmem:[%s9 + $0x50] sm:$0xf]
    %v1659 = vld [vmem:[%s9 + $0x54] sm:$0xf]
    %v1660 = vld [vmem:[%s9 + $0x58] sm:$0xf]
    %v1661 = vld [vmem:[%s9 + $0x5c] sm:$0xf]
    %v1662 = vld [vmem:[%s9 + $0x60] sm:$0xf]
    %v1663 = vld [vmem:[%s9 + $0x64] sm:$0xf]
    %v1664 = vld [vmem:[%s9 + $0x68] sm:$0xf]
    %v1665 = vld [vmem:[%s9 + $0x6c] sm:$0xf]
    %v1666 = vld [vmem:[%s9 + $0x70] sm:$0xf]
    %v1667 = vld [vmem:[%s9 + $0x74] sm:$0xf]
    %v1668 = vld [vmem:[%s9 + $0x78] sm:$0xf]
    %v1669 = vld [vmem:[%s9 + $0x7c] sm:$0xf]
    %v1670 = vld [vmem:[%s10] sm:$0x1]
    %v1672 = vlaneseq
    %v1673 = vshrl.u32 %v1672, 7
    %v1674 = vsub.s32 0, %v1673
    %v1675 = vrot.slane %v1670, %v1674
    %v1709 = vunpack.c.l.b16 %v1638
    %v1710 = vunpack.c.l.b16 %v1639
    %v1711 = vunpack.c.l.b16 %v1640
    %v1712 = vunpack.c.l.b16 %v1641
    %v1713 = vunpack.c.l.b16 %v1642
    %v1714 = vunpack.c.l.b16 %v1643
    %v1715 = vunpack.c.l.b16 %v1644
    %v1716 = vunpack.c.l.b16 %v1645
    %v1717 = vunpack.c.l.b16 %v1646
    %v1718 = vunpack.c.l.b16 %v1647
    %v1719 = vunpack.c.l.b16 %v1648
    %v1720 = vunpack.c.l.b16 %v1649
    %v1721 = vunpack.c.l.b16 %v1650
    %v1722 = vunpack.c.l.b16 %v1651
    %v1723 = vunpack.c.l.b16 %v1652
    %v1724 = vunpack.c.l.b16 %v1653
    %v1725 = vunpack.c.l.b16 %v1654
    %v1726 = vunpack.c.l.b16 %v1655
    %v1727 = vunpack.c.l.b16 %v1656
    %v1728 = vunpack.c.l.b16 %v1657
    %v1729 = vunpack.c.l.b16 %v1658
    %v1730 = vunpack.c.l.b16 %v1659
    %v1731 = vunpack.c.l.b16 %v1660
    %v1732 = vunpack.c.l.b16 %v1661
    %v1733 = vunpack.c.l.b16 %v1662
    %v1734 = vunpack.c.l.b16 %v1663
    %v1735 = vunpack.c.l.b16 %v1664
    %v1736 = vunpack.c.l.b16 %v1665
    %v1737 = vunpack.c.l.b16 %v1666
    %v1738 = vunpack.c.l.b16 %v1667
    %v1739 = vunpack.c.l.b16 %v1668
    %v1740 = vunpack.c.l.b16 %v1669
    %v1741 = vpack.c.b16 %v1710, %v1709
    %v1742 = vpack.c.b16 %v1712, %v1711
    %v1743 = vpack.c.b16 %v1714, %v1713
    %v1744 = vpack.c.b16 %v1716, %v1715
    %v1745 = vpack.c.b16 %v1718, %v1717
    %v1746 = vpack.c.b16 %v1720, %v1719
    %v1747 = vpack.c.b16 %v1722, %v1721
    %v1748 = vpack.c.b16 %v1724, %v1723
    %v1749 = vpack.c.b16 %v1726, %v1725
    %v1750 = vpack.c.b16 %v1728, %v1727
    %v1751 = vpack.c.b16 %v1730, %v1729
    %v1752 = vpack.c.b16 %v1732, %v1731
    %v1753 = vpack.c.b16 %v1734, %v1733
    %v1754 = vpack.c.b16 %v1736, %v1735
    %v1755 = vpack.c.b16 %v1738, %v1737
    %v1756 = vpack.c.b16 %v1740, %v1739
    %1773 = vmatprep.subr.bf16.mxu0 0
    %1774 = vmatpush1.bf16.msra.mxu0 %v1741
    %1775 = vmatprep.subr.bf16.mxu0 0
    %1776 = vmatpush1.bf16.msra.mxu0 %v1742
    %1777 = vmatprep.subr.bf16.mxu0 0
    %1778 = vmatpush1.bf16.msra.mxu0 %v1743
    %1779 = vmatprep.subr.bf16.mxu0 0
    %1780 = vmatpush1.bf16.msra.mxu0 %v1744
    %1781 = vmatprep.subr.bf16.mxu0 0
    %1782 = vmatpush1.bf16.msra.mxu0 %v1745
    %1783 = vmatprep.subr.bf16.mxu0 0
    %1784 = vmatpush1.bf16.msra.mxu0 %v1746
    %1785 = vmatprep.subr.bf16.mxu0 0
    %1786 = vmatpush1.bf16.msra.mxu0 %v1747
    %1787 = vmatprep.subr.bf16.mxu0 0
    %1788 = vmatpush1.bf16.msra.mxu0 %v1748
    %1789 = vmatprep.subr.bf16.mxu0 0
    %1790 = vmatpush1.bf16.msra.mxu0 %v1749
    %1791 = vmatprep.subr.bf16.mxu0 0
    %1792 = vmatpush1.bf16.msra.mxu0 %v1750
    %1793 = vmatprep.subr.bf16.mxu0 0
    %1794 = vmatpush1.bf16.msra.mxu0 %v1751
    %1795 = vmatprep.subr.bf16.mxu0 0
    %1796 = vmatpush1.bf16.msra.mxu0 %v1752
    %1797 = vmatprep.subr.bf16.mxu0 0
    %1798 = vmatpush1.bf16.msra.mxu0 %v1753
    %1799 = vmatprep.subr.bf16.mxu0 0
    %1800 = vmatpush1.bf16.msra.mxu0 %v1754
    %1801 = vmatprep.subr.bf16.mxu0 0
    %1802 = vmatpush1.bf16.msra.mxu0 %v1755
    %1803 = vmatprep.subr.bf16.mxu0 0
    %1804 = vmatpush1.bf16.msra.mxu0 %v1756
    %1805 = vmatprep.mubr.bf16.mxu0 %v1631
    %1806 = vmatmul.mubr.bf16.gmra.mrb[0].mxu0 %v1630
    %v1807 = vpop.f32.mrb[0].mxu0
    %v1808 = vadd.f32 %v1675, %v1807
    %v1809 = vpop.f32.mrb[0].mxu0
    %v1810 = vpop.f32.mrb[0].mxu0
    %v1811 = vadd.f32 %v1675, %v1810
    %v1812 = vpop.f32.mrb[0].mxu0
    %1813 = vmatprep.mubr.bf16.mxu0 %v1633
    %1814 = vmatmul.mubr.bf16.gmra.mrb[0].mxu0 %v1632
    %v1815 = vpop.f32.mrb[0].mxu0
    %v1816 = vadd.f32 %v1675, %v1815
    %v1817 = vpop.f32.mrb[0].mxu0
    %v1818 = vpop.f32.mrb[0].mxu0
    %v1819 = vadd.f32 %v1675, %v1818
    %v1820 = vpop.f32.mrb[0].mxu0
    %1821 = vmatprep.mubr.bf16.mxu0 %v1635
    %1822 = vmatmul.mubr.bf16.gmra.mrb[0].mxu0 %v1634
    %v1823 = vpop.f32.mrb[0].mxu0
    %v1824 = vadd.f32 %v1675, %v1823
    %v1825 = vpop.f32.mrb[0].mxu0
    %v1826 = vpop.f32.mrb[0].mxu0
    %v1827 = vadd.f32 %v1675, %v1826
    %v1828 = vpop.f32.mrb[0].mxu0
    %1829 = vmatprep.mubr.bf16.mxu0 %v1637
    %1830 = vmatmul.mubr.bf16.gmra.mrb[0].mxu0 %v1636
    %v1831 = vpop.f32.mrb[0].mxu0
    %v1832 = vadd.f32 %v1675, %v1831
    %v1833 = vpop.f32.mrb[0].mxu0
    %v1834 = vpop.f32.mrb[0].mxu0
    %v1835 = vadd.f32 %v1675, %v1834
    %v1836 = vpop.f32.mrb[0].mxu0
    %1837 = vdwg.mxu0
    %v1838 = vadd.f32 %v1323, %v1808
    %v1839 = vadd.f32 %v1324, %v1811
    %v1840 = vadd.f32 %v1325, %v1816
    %v1841 = vadd.f32 %v1326, %v1819
    %v1842 = vadd.f32 %v1327, %v1824
    %v1843 = vadd.f32 %v1328, %v1827
    %v1844 = vadd.f32 %v1329, %v1832
    %v1845 = vadd.f32 %v1330, %v1835
    %1854 = vrot.lane.b32.xlu0 %v779, 64
    %v1855 = vpop.permute.xlu0 %1854
    %1856 = vrot.lane.b32.xlu0 %v780, 64
    %v1857 = vpop.permute.xlu0 %1856
    %1858 = vrot.lane.b32.xlu0 %v781, 64
    %v1859 = vpop.permute.xlu0 %1858
    %1860 = vrot.lane.b32.xlu0 %v782, 64
    %v1861 = vpop.permute.xlu0 %1860
    %1862 = vrot.lane.b32.xlu0 %v1227, 64
    %v1863 = vpop.permute.xlu0 %1862
    %1864 = vrot.lane.b32.xlu0 %v1228, 64
    %v1865 = vpop.permute.xlu0 %1864
    %1866 = vrot.lane.b32.xlu0 %v1229, 64
    %v1867 = vpop.permute.xlu0 %1866
    %1868 = vrot.lane.b32.xlu0 %v1230, 64
    %v1869 = vpop.permute.xlu0 %1868
    %v1878 = vsel %vm128, %v1838, %v1855
    %v1879 = vsel %vm128, %v1839, %v1857
    %v1880 = vsel %vm128, %v1840, %v1859
    %v1881 = vsel %vm128, %v1841, %v1861
    %v1882 = vsel %vm128, %v1842, %v1863
    %v1883 = vsel %vm128, %v1843, %v1865
    %v1884 = vsel %vm128, %v1844, %v1867
    %v1885 = vsel %vm128, %v1845, %v1869
    %1886 = vst [vmem:[#allocation13] sm:$0xff] %v1878
    %1887 = vst [vmem:[#allocation13 + $0x8] sm:$0xff] %v1879
    %1888 = vst [vmem:[#allocation13 + $0x10] sm:$0xff] %v1880
    %1889 = vst [vmem:[#allocation13 + $0x18] sm:$0xff] %v1881
    %1890 = vst [vmem:[#allocation13 + $0x20] sm:$0xff] %v1882
    %1891 = vst [vmem:[#allocation13 + $0x28] sm:$0xff] %v1883
    %1892 = vst [vmem:[#allocation13 + $0x30] sm:$0xff] %v1884
    %1893 = vst [vmem:[#allocation13 + $0x38] sm:$0xff] %v1885
    // Predicated region
    $region78: #{tpu_custom_call.1} parent=1 // pred_check
      _
    $region79: #{tpu_custom_call.1} parent=1 // pred_check_branch
      %1895 = sbr.rel (0) target = $region81
    $region80: #{tpu_custom_call.1} parent=1 // pred_region
      %s1897 = ssub.s32 1024, 1024
      %1898 = vsyncadd [#allocation4], %s1897
      %s1899 = sshll.u32 [#allocation13], 4
      %s1900 = int_to_ptr.vmem [resolvable:$true] %s1899
      %1905 = dma.vmem_to_hbm [thread:$0]  %s1900, 1024, %s13, [#allocation4], 128, 128, 8
    $region81: #{tpu_custom_call.1} parent=1 // pred_fallthru
      _
    // Predicated region
    $region82: #{tpu_custom_call.1} parent=1 // pred_check
      _
    $region83: #{tpu_custom_call.1} parent=1 // pred_check_branch
      %1907 = sbr.rel (0) target = $region85
    $region84: #{tpu_custom_call.1} parent=1 // pred_region
      %1908 = dma.done [#allocation4], 1024
    $region85: #{tpu_custom_call.1} parent=1 // pred_fallthru
      _
    %1909 = vsyncpa [#allocation3], 1
    %1910 = vsyncpa [#allocation6], 1
    %1911 = vsyncpa [#allocation9], 1
    %1912 = vsyncpa [#allocation12], 1
    %1913 = vsyncpa [#allocation4], 1

</llo_original>
